<compile_context>
chip_gen: v7x
topology: tpu7x:2x2x1
jax: 0.10.0
libtpu: 0.0.40
codegen_flags: <defaults>
</compile_context>

<pallas_src>
import functools

import jax
import jax.numpy as jnp
from jax import lax
from jax.experimental import pallas as pl
from jax.experimental.pallas import tpu as pltpu


def _round_up(x, m):
    return (x + m - 1) // m * m


# ----------------------------------------------------------------------------
# Kernel 1: fused Conv2d(3x3, pad=1) + bias + ReLU + MaxPool2d(2)
# ----------------------------------------------------------------------------
def conv_relu_pool_kernel(p_ref, w_ref, b_ref, o_ref, *, bm):
    """p_ref: (4*bm, K) bf16 -- rows [o*bm:(o+1)*bm] hold pool-offset o's patches
       w_ref: (K, Cout) bf16, b_ref: (1, Cout) f32, o_ref: (bm, Cout) bf16."""
    # One MXU pass for all four pool branches (single weight push).
    d = jnp.dot(p_ref[...], w_ref[...], preferred_element_type=jnp.float32)
    # 2x2 max-pool == elementwise max over the four aligned sublane slices.
    m = jnp.maximum(jnp.maximum(d[0 * bm:1 * bm], d[1 * bm:2 * bm]),
                    jnp.maximum(d[2 * bm:3 * bm], d[3 * bm:4 * bm]))
    # Single bias + ReLU (valid: shared bias, monotone ReLU).
    o_ref[...] = jnp.maximum(m + b_ref[...], 0.0).astype(o_ref.dtype)


def conv_relu_pool(x_nhwc, w_hwio, bias):
    """x_nhwc: (N,H,W,Cin); w_hwio: (3,3,Cin,Cout) -> (N,H//2,W//2,Cout) bf16."""
    N, H, W, Cin = x_nhwc.shape
    Cout = w_hwio.shape[-1]
    Ho, Wo = H // 2, W // 2
    K = 9 * Cin
    M = N * Ho * Wo

    # --- glue: bf16 cast + zero-pad + im2col grouped by pool offset (data movement only) ---
    x = x_nhwc.astype(jnp.bfloat16)
    xp = jnp.pad(x, ((0, 0), (1, 1), (1, 1), (0, 0)))
    groups = []
    for ph in range(2):
        for pw in range(2):
            taps = []
            for kh in range(3):
                for kw in range(3):
                    taps.append(xp[:, ph + kh: ph + kh + H: 2,
                                   pw + kw: pw + kw + W: 2, :])
            g = jnp.stack(taps, axis=3)              # (N, Ho, Wo, 9, Cin)
            groups.append(g.reshape(M, K))
    patches4 = jnp.stack(groups, axis=0)             # (4, M, K)

    # Tile selection: biggest useful tile, >=2 grid steps when possible (v7x dual TC).
    bm = min(512, _round_up(M, 8))
    if _round_up(M, 8) // bm < 2 and M >= 16:
        bm = _round_up(pl.cdiv(_round_up(M, 8), 2), 8)
    grid = pl.cdiv(M, bm)
    M_pad = grid * bm
    if M_pad != M:
        patches4 = jnp.pad(patches4, ((0, 0), (0, M_pad - M), (0, 0)))
    # Contiguous per-tile slab: (grid, 4, bm, K) -> (grid*4*bm, K).
    patches = patches4.reshape(4, grid, bm, K).transpose(1, 0, 2, 3) \
                      .reshape(grid * 4 * bm, K)

    wmat = w_hwio.reshape(K, Cout).astype(jnp.bfloat16)   # (kh,kw,ci) -> rows
    b2d = bias.reshape(1, Cout).astype(jnp.float32)

    out = pl.pallas_call(
        functools.partial(conv_relu_pool_kernel, bm=bm),
        out_shape=jax.ShapeDtypeStruct((M_pad, Cout), jnp.bfloat16),
        grid_spec=pltpu.PrefetchScalarGridSpec(
            num_scalar_prefetch=0,
            grid=(grid,),
            in_specs=[
                pl.BlockSpec((4 * bm, K), lambda i: (i, 0)),
                pl.BlockSpec((K, Cout), lambda i: (0, 0)),   # resident weight
                pl.BlockSpec((1, Cout), lambda i: (0, 0)),
            ],
            out_specs=pl.BlockSpec((bm, Cout), lambda i: (i, 0)),
        ),
        compiler_params=pltpu.CompilerParams(
            dimension_semantics=("parallel",),
            vmem_limit_bytes=32 * 1024 * 1024),
    )(patches, wmat, b2d)
    return out[:M].reshape(N, Ho, Wo, Cout)


# ----------------------------------------------------------------------------
# Kernel 2: fused Linear(fin -> 128) -> Linear(128 -> num_ways),
# K-tiled over fin with an f32 VMEM accumulator.
# ----------------------------------------------------------------------------
def mlp_kernel(x_ref, w1_ref, b1_ref, w2_ref, b2_ref, o_ref, acc_ref):
    k = pl.program_id(0)

    @pl.when(k == 0)
    def _():
        acc_ref[...] = jnp.zeros_like(acc_ref)

    acc_ref[...] += jnp.dot(x_ref[...], w1_ref[...],
                            preferred_element_type=jnp.float32)

    @pl.when(k == pl.num_programs(0) - 1)
    def _():
        h = acc_ref[...] + b1_ref[...]                      # no activation (as in module)
        o = jnp.dot(h.astype(w2_ref.dtype), w2_ref[...],
                    preferred_element_type=jnp.float32) + b2_ref[...]
        o_ref[...] = o.astype(o_ref.dtype)


def mlp(x, w1, b1, w2, b2, *, bk=256):
    Nb, F = x.shape
    Hd = w1.shape[1]
    C = w2.shape[1]

    x = x.astype(jnp.bfloat16)
    w1 = w1.astype(jnp.bfloat16)
    w2 = w2.astype(jnp.bfloat16)

    F_pad = _round_up(F, bk)
    if F_pad != F:   # zero-pad the reduction dim (contributes zero)
        x = jnp.pad(x, ((0, 0), (0, F_pad - F)))
        w1 = jnp.pad(w1, ((0, F_pad - F), (0, 0)))
    grid = F_pad // bk

    return pl.pallas_call(
        mlp_kernel,
        out_shape=jax.ShapeDtypeStruct((Nb, C), jnp.float32),
        grid_spec=pltpu.PrefetchScalarGridSpec(
            num_scalar_prefetch=0,
            grid=(grid,),
            in_specs=[
                pl.BlockSpec((Nb, bk), lambda k: (0, k)),
                pl.BlockSpec((bk, Hd), lambda k: (k, 0)),
                pl.BlockSpec((1, Hd), lambda k: (0, 0)),
                pl.BlockSpec((Hd, C), lambda k: (0, 0)),
                pl.BlockSpec((1, C), lambda k: (0, 0)),
            ],
            out_specs=pl.BlockSpec((Nb, C), lambda k: (0, 0)),
            scratch_shapes=[pltpu.VMEM((Nb, Hd), jnp.float32)],
        ),
        compiler_params=pltpu.CompilerParams(
            dimension_semantics=("arbitrary",),
            vmem_limit_bytes=32 * 1024 * 1024),
    )(x, w1, b1.reshape(1, Hd).astype(jnp.float32),
      w2, b2.reshape(1, C).astype(jnp.float32))


# ----------------------------------------------------------------------------
# Full EncoderModel forward
# ----------------------------------------------------------------------------
def encoder_model_forward(x_nchw, params):
    # x_nchw: (N, 3, H, W), mirroring the PyTorch input layout.
    x = jnp.transpose(x_nchw, (0, 2, 3, 1))                    # NHWC
    x = conv_relu_pool(x, params["w1"], params["b1"])          # (N, H/2,  W/2,  32)
    x = conv_relu_pool(x, params["w2"], params["b2"])          # (N, H/4,  W/4,  64)
    x = conv_relu_pool(x, params["w3"], params["b3"])          # (N, H/8,  W/8, 128)
    N = x.shape[0]
    # NHWC flatten; wl1's rows were permuted once at init so this is exactly
    # PyTorch's NCHW x.view(N, -1) followed by the Linear (no transpose needed).
    x = x.reshape(N, -1)
    return mlp(x, params["wl1"], params["bl1"],
               params["wl2"], params["bl2"])


# ----------------------------------------------------------------------------
# Deterministic synthetic parameters (shapes from EncoderModel.__init__)
# ----------------------------------------------------------------------------
def init_params(key, image_size, num_ways):
    ks = jax.random.split(key, 10)

    def conv_w(k, cout, cin):
        # generated in PyTorch OIHW layout, converted to HWIO for NHWC conv
        w = jax.random.normal(k, (cout, cin, 3, 3), jnp.float32) * 0.1
        return jnp.transpose(w, (2, 3, 1, 0))

    fin = 2 * image_size * image_size
    Hf = Wf = image_size // 8
    C3 = 128
    assert fin == Hf * Wf * C3

    # Linear weights generated in PyTorch (out, in) layout; wl1's input rows are
    # in NCHW-flatten (c, h, w) order. Store as (in, out).
    wl1_nchw = (jax.random.normal(ks[6], (128, fin), jnp.float32) * 0.05).T

    # Permute wl1 rows once so the Pallas path can consume the NHWC flatten
    # directly: NHWC position (h, w, c) <- NCHW index c*Hf*Wf + h*Wf + w.
    c = jnp.arange(C3)
    h = jnp.arange(Hf)
    w = jnp.arange(Wf)
    nchw_idx = (c[None, None, :] * (Hf * Wf)
                + h[:, None, None] * Wf
                + w[None, :, None]).reshape(-1)
    wl1_nhwc = wl1_nchw[nchw_idx]

    p = {
        "w1": conv_w(ks[0], 32, 3),
        "b1": jax.random.normal(ks[1], (32,), jnp.float32) * 0.1,
        "w2": conv_w(ks[2], 64, 32),
        "b2": jax.random.normal(ks[3], (64,), jnp.float32) * 0.1,
        "w3": conv_w(ks[4], 128, 64),
        "b3": jax.random.normal(ks[5], (128,), jnp.float32) * 0.1,
        "wl1": wl1_nhwc,        # NHWC-flatten row order (Pallas path)
        "wl1_nchw": wl1_nchw,   # NCHW-flatten row order (reference path)
        "bl1": jax.random.normal(ks[7], (128,), jnp.float32) * 0.05,
        "wl2": (jax.random.normal(ks[8], (num_ways, 128), jnp.float32) * 0.05).T,
        "bl2": jax.random.normal(ks[9], (num_ways,), jnp.float32) * 0.05,
    }
    return p


# ----------------------------------------------------------------------------
# Pure-JAX f32 reference (independent of the Pallas path) for validation
# ----------------------------------------------------------------------------
def reference_forward(x_nchw, params):
    x = jnp.transpose(x_nchw, (0, 2, 3, 1))
    for wk, bk in (("w1", "b1"), ("w2", "b2"), ("w3", "b3")):
        x = lax.conv_general_dilated(
            x, params[wk], window_strides=(1, 1), padding="SAME",
            dimension_numbers=("NHWC", "HWIO", "NHWC"),
            precision=lax.Precision.HIGHEST)
        x = jnp.maximum(x + params[bk], 0.0)
        x = lax.reduce_window(x, -jnp.inf, lax.max,
                              (1, 2, 2, 1), (1, 2, 2, 1), "VALID")
    N = x.shape[0]
    x = jnp.transpose(x, (0, 3, 1, 2)).reshape(N, -1)   # PyTorch NCHW flatten
    h = jnp.dot(x, params["wl1_nchw"],
                precision=lax.Precision.HIGHEST) + params["bl1"]
    return jnp.dot(h, params["wl2"],
                   precision=lax.Precision.HIGHEST) + params["bl2"]


if __name__ == "__main__":
    image_size, num_ways, batch = 16, 5, 2   # config.image_size=16, config.num_ways=5
    key = jax.random.PRNGKey(0)
    kx, kp = jax.random.split(key)
    x = jax.random.normal(kx, (batch, 3, image_size, image_size), jnp.float32)
    params = init_params(kp, image_size, num_ways)

    out = jax.jit(encoder_model_forward)(x, params)
    out = jax.block_until_ready(out)
    assert out.shape == (batch, num_ways), out.shape

    ref = reference_forward(x, params)
    rel_err = float(jnp.max(jnp.abs(out - ref)) / (jnp.max(jnp.abs(ref)) + 1e-6))
    if rel_err > 5e-2:   # bf16 operands / f32 accumulation vs f32 HIGHEST reference
        raise AssertionError(f"Pallas output does not match reference, rel_err={rel_err:.4f}")
    print("KERNEL_OK")
</pallas_src>

<mosaic_0001>
module attributes {stable_mosaic.version = 11 : i64} {
  func.func @conv_relu_pool_kernel(%arg0: i32, %arg1: memref<256x27xbf16, #tpu.memory_space<vmem>>, %arg2: memref<27x32xbf16, #tpu.memory_space<vmem>>, %arg3: memref<1x32xf32, #tpu.memory_space<vmem>>, %arg4: memref<64x32xbf16, #tpu.memory_space<vmem>>) attributes {dimension_semantics = [#tpu.dimension_semantics<parallel>], iteration_bounds = array<i64: 2>, scalar_prefetch = 0 : i64, scratch_operands = 0 : i64, tpu.core_type = #tpu.core_type<tc>, window_params = [{transform_indices = @transform_0, window_bounds = array<i64: 256, 27>}, {pipeline_mode = #tpu.pipeline_mode<synchronous>, transform_indices = @transform_1, window_bounds = array<i64: 27, 32>}, {pipeline_mode = #tpu.pipeline_mode<synchronous>, transform_indices = @transform_2, window_bounds = array<i64: 1, 32>}, {transform_indices = @transform_3, window_bounds = array<i64: 64, 32>}]} {
    %c0 = arith.constant 0 : index
    %c0_0 = arith.constant 0 : index
    %0 = vector.load %arg1[%c0, %c0_0] : memref<256x27xbf16, #tpu.memory_space<vmem>>, vector<256x27xbf16>
    %c0_1 = arith.constant 0 : index
    %c0_2 = arith.constant 0 : index
    %1 = vector.load %arg2[%c0_1, %c0_2] : memref<27x32xbf16, #tpu.memory_space<vmem>>, vector<27x32xbf16>
    %cst = arith.constant dense<0.000000e+00> : vector<256x32xf32>
    %2 = tpu.matmul %0, %1, %cst {dimension_numbers = #tpu.dot_dimension_numbers<[1], [0], [0], [1], [0, 0, 1, 1], [], []>} : vector<256x27xbf16>, vector<27x32xbf16>, vector<256x32xf32> -> vector<256x32xf32>
    %3 = vector.extract_strided_slice %2 {offsets = [0, 0], sizes = [64, 32], strides = [1, 1]} : vector<256x32xf32> to vector<64x32xf32>
    %4 = vector.extract_strided_slice %2 {offsets = [64, 0], sizes = [64, 32], strides = [1, 1]} : vector<256x32xf32> to vector<64x32xf32>
    %5 = arith.maximumf %3, %4 : vector<64x32xf32>
    %6 = vector.extract_strided_slice %2 {offsets = [128, 0], sizes = [64, 32], strides = [1, 1]} : vector<256x32xf32> to vector<64x32xf32>
    %7 = vector.extract_strided_slice %2 {offsets = [192, 0], sizes = [64, 32], strides = [1, 1]} : vector<256x32xf32> to vector<64x32xf32>
    %8 = arith.maximumf %6, %7 : vector<64x32xf32>
    %9 = arith.maximumf %5, %8 : vector<64x32xf32>
    %c0_3 = arith.constant 0 : index
    %c0_4 = arith.constant 0 : index
    %10 = vector.load %arg3[%c0_3, %c0_4] : memref<1x32xf32, #tpu.memory_space<vmem>>, vector<1x32xf32>
    %11 = vector.broadcast %10 : vector<1x32xf32> to vector<64x32xf32>
    %12 = arith.addf %9, %11 : vector<64x32xf32>
    %cst_5 = arith.constant 0.000000e+00 : f32
    %13 = vector.broadcast %cst_5 : f32 to vector<64x32xf32>
    %14 = arith.maximumf %12, %13 : vector<64x32xf32>
    %15 = arith.truncf %14 : vector<64x32xf32> to vector<64x32xbf16>
    %c0_6 = arith.constant 0 : index
    %c0_7 = arith.constant 0 : index
    %16 = vector.load %arg4[%c0_6, %c0_7] : memref<64x32xbf16, #tpu.memory_space<vmem>>, vector<64x32xbf16>
    tpu.vector_store %arg4[%c0_6, %c0_7], %15 {strides = array<i32>} : memref<64x32xbf16, #tpu.memory_space<vmem>>, vector<64x32xbf16>,
    return
  }
  func.func @transform_0(%arg0: i32) -> (i32, i32) {
    %c0_i32 = arith.constant 0 : i32
    %c0_i32_0 = arith.constant 0 : i32
    return %arg0, %c0_i32 : i32, i32
  }
  func.func @transform_1(%arg0: i32) -> (i32, i32) {
    %c0_i32 = arith.constant 0 : i32
    %c0_i32_0 = arith.constant 0 : i32
    %c0_i32_1 = arith.constant 0 : i32
    return %c0_i32, %c0_i32_0 : i32, i32
  }
  func.func @transform_2(%arg0: i32) -> (i32, i32) {
    %c0_i32 = arith.constant 0 : i32
    %c0_i32_0 = arith.constant 0 : i32
    %c0_i32_1 = arith.constant 0 : i32
    return %c0_i32, %c0_i32_0 : i32, i32
  }
  func.func @transform_3(%arg0: i32) -> (i32, i32) {
    %c0_i32 = arith.constant 0 : i32
    %c0_i32_0 = arith.constant 0 : i32
    return %arg0, %c0_i32 : i32, i32
  }
}

module attributes {stable_mosaic.version = 11 : i64} {
  func.func @conv_relu_pool_kernel(%arg0: i32, %arg1: memref<64x288xbf16, #tpu.memory_space<vmem>>, %arg2: memref<288x64xbf16, #tpu.memory_space<vmem>>, %arg3: memref<1x64xf32, #tpu.memory_space<vmem>>, %arg4: memref<16x64xbf16, #tpu.memory_space<vmem>>) attributes {dimension_semantics = [#tpu.dimension_semantics<parallel>], iteration_bounds = array<i64: 2>, scalar_prefetch = 0 : i64, scratch_operands = 0 : i64, tpu.core_type = #tpu.core_type<tc>, window_params = [{transform_indices = @transform_0, window_bounds = array<i64: 64, 288>}, {pipeline_mode = #tpu.pipeline_mode<synchronous>, transform_indices = @transform_1, window_bounds = array<i64: 288, 64>}, {pipeline_mode = #tpu.pipeline_mode<synchronous>, transform_indices = @transform_2, window_bounds = array<i64: 1, 64>}, {transform_indices = @transform_3, window_bounds = array<i64: 16, 64>}]} {
    %c0 = arith.constant 0 : index
    %c0_0 = arith.constant 0 : index
    %0 = vector.load %arg1[%c0, %c0_0] : memref<64x288xbf16, #tpu.memory_space<vmem>>, vector<64x288xbf16>
    %c0_1 = arith.constant 0 : index
    %c0_2 = arith.constant 0 : index
    %1 = vector.load %arg2[%c0_1, %c0_2] : memref<288x64xbf16, #tpu.memory_space<vmem>>, vector<288x64xbf16>
    %cst = arith.constant dense<0.000000e+00> : vector<64x64xf32>
    %2 = tpu.matmul %0, %1, %cst {dimension_numbers = #tpu.dot_dimension_numbers<[1], [0], [0], [1], [0, 0, 1, 1], [], []>} : vector<64x288xbf16>, vector<288x64xbf16>, vector<64x64xf32> -> vector<64x64xf32>
    %3 = vector.extract_strided_slice %2 {offsets = [0, 0], sizes = [16, 64], strides = [1, 1]} : vector<64x64xf32> to vector<16x64xf32>
    %4 = vector.extract_strided_slice %2 {offsets = [16, 0], sizes = [16, 64], strides = [1, 1]} : vector<64x64xf32> to vector<16x64xf32>
    %5 = arith.maximumf %3, %4 : vector<16x64xf32>
    %6 = vector.extract_strided_slice %2 {offsets = [32, 0], sizes = [16, 64], strides = [1, 1]} : vector<64x64xf32> to vector<16x64xf32>
    %7 = vector.extract_strided_slice %2 {offsets = [48, 0], sizes = [16, 64], strides = [1, 1]} : vector<64x64xf32> to vector<16x64xf32>
    %8 = arith.maximumf %6, %7 : vector<16x64xf32>
    %9 = arith.maximumf %5, %8 : vector<16x64xf32>
    %c0_3 = arith.constant 0 : index
    %c0_4 = arith.constant 0 : index
    %10 = vector.load %arg3[%c0_3, %c0_4] : memref<1x64xf32, #tpu.memory_space<vmem>>, vector<1x64xf32>
    %11 = vector.broadcast %10 : vector<1x64xf32> to vector<16x64xf32>
    %12 = arith.addf %9, %11 : vector<16x64xf32>
    %cst_5 = arith.constant 0.000000e+00 : f32
    %13 = vector.broadcast %cst_5 : f32 to vector<16x64xf32>
    %14 = arith.maximumf %12, %13 : vector<16x64xf32>
    %15 = arith.truncf %14 : vector<16x64xf32> to vector<16x64xbf16>
    %c0_6 = arith.constant 0 : index
    %c0_7 = arith.constant 0 : index
    %16 = vector.load %arg4[%c0_6, %c0_7] : memref<16x64xbf16, #tpu.memory_space<vmem>>, vector<16x64xbf16>
    tpu.vector_store %arg4[%c0_6, %c0_7], %15 {strides = array<i32>} : memref<16x64xbf16, #tpu.memory_space<vmem>>, vector<16x64xbf16>,
    return
  }
  func.func @transform_0(%arg0: i32) -> (i32, i32) {
    %c0_i32 = arith.constant 0 : i32
    %c0_i32_0 = arith.constant 0 : i32
    return %arg0, %c0_i32 : i32, i32
  }
  func.func @transform_1(%arg0: i32) -> (i32, i32) {
    %c0_i32 = arith.constant 0 : i32
    %c0_i32_0 = arith.constant 0 : i32
    %c0_i32_1 = arith.constant 0 : i32
    return %c0_i32, %c0_i32_0 : i32, i32
  }
  func.func @transform_2(%arg0: i32) -> (i32, i32) {
    %c0_i32 = arith.constant 0 : i32
    %c0_i32_0 = arith.constant 0 : i32
    %c0_i32_1 = arith.constant 0 : i32
    return %c0_i32, %c0_i32_0 : i32, i32
  }
  func.func @transform_3(%arg0: i32) -> (i32, i32) {
    %c0_i32 = arith.constant 0 : i32
    %c0_i32_0 = arith.constant 0 : i32
    return %arg0, %c0_i32 : i32, i32
  }
}

module attributes {stable_mosaic.version = 11 : i64} {
  func.func @conv_relu_pool_kernel(%arg0: i32, %arg1: memref<32x576xbf16, #tpu.memory_space<vmem>>, %arg2: memref<576x128xbf16, #tpu.memory_space<vmem>>, %arg3: memref<1x128xf32, #tpu.memory_space<vmem>>, %arg4: memref<8x128xbf16, #tpu.memory_space<vmem>>) attributes {dimension_semantics = [#tpu.dimension_semantics<parallel>], iteration_bounds = array<i64: 1>, scalar_prefetch = 0 : i64, scratch_operands = 0 : i64, tpu.core_type = #tpu.core_type<tc>, window_params = [{transform_indices = @transform_0, window_bounds = array<i64: 32, 576>}, {pipeline_mode = #tpu.pipeline_mode<synchronous>, transform_indices = @transform_1, window_bounds = array<i64: 576, 128>}, {pipeline_mode = #tpu.pipeline_mode<synchronous>, transform_indices = @transform_2, window_bounds = array<i64: 1, 128>}, {transform_indices = @transform_3, window_bounds = array<i64: 8, 128>}]} {
    %c0 = arith.constant 0 : index
    %c0_0 = arith.constant 0 : index
    %0 = vector.load %arg1[%c0, %c0_0] : memref<32x576xbf16, #tpu.memory_space<vmem>>, vector<32x576xbf16>
    %c0_1 = arith.constant 0 : index
    %c0_2 = arith.constant 0 : index
    %1 = vector.load %arg2[%c0_1, %c0_2] : memref<576x128xbf16, #tpu.memory_space<vmem>>, vector<576x128xbf16>
    %cst = arith.constant dense<0.000000e+00> : vector<32x128xf32>
    %2 = tpu.matmul %0, %1, %cst {dimension_numbers = #tpu.dot_dimension_numbers<[1], [0], [0], [1], [0, 0, 1, 1], [], []>} : vector<32x576xbf16>, vector<576x128xbf16>, vector<32x128xf32> -> vector<32x128xf32>
    %3 = vector.extract_strided_slice %2 {offsets = [0, 0], sizes = [8, 128], strides = [1, 1]} : vector<32x128xf32> to vector<8x128xf32>
    %4 = vector.extract_strided_slice %2 {offsets = [8, 0], sizes = [8, 128], strides = [1, 1]} : vector<32x128xf32> to vector<8x128xf32>
    %5 = arith.maximumf %3, %4 : vector<8x128xf32>
    %6 = vector.extract_strided_slice %2 {offsets = [16, 0], sizes = [8, 128], strides = [1, 1]} : vector<32x128xf32> to vector<8x128xf32>
    %7 = vector.extract_strided_slice %2 {offsets = [24, 0], sizes = [8, 128], strides = [1, 1]} : vector<32x128xf32> to vector<8x128xf32>
    %8 = arith.maximumf %6, %7 : vector<8x128xf32>
    %9 = arith.maximumf %5, %8 : vector<8x128xf32>
    %c0_3 = arith.constant 0 : index
    %c0_4 = arith.constant 0 : index
    %10 = vector.load %arg3[%c0_3, %c0_4] : memref<1x128xf32, #tpu.memory_space<vmem>>, vector<1x128xf32>
    %11 = vector.broadcast %10 : vector<1x128xf32> to vector<8x128xf32>
    %12 = arith.addf %9, %11 : vector<8x128xf32>
    %cst_5 = arith.constant 0.000000e+00 : f32
    %13 = vector.broadcast %cst_5 : f32 to vector<8x128xf32>
    %14 = arith.maximumf %12, %13 : vector<8x128xf32>
    %15 = arith.truncf %14 : vector<8x128xf32> to vector<8x128xbf16>
    %c0_6 = arith.constant 0 : index
    %c0_7 = arith.constant 0 : index
    %16 = vector.load %arg4[%c0_6, %c0_7] : memref<8x128xbf16, #tpu.memory_space<vmem>>, vector<8x128xbf16>
    tpu.vector_store %arg4[%c0_6, %c0_7], %15 {strides = array<i32>} : memref<8x128xbf16, #tpu.memory_space<vmem>>, vector<8x128xbf16>,
    return
  }
  func.func @transform_0(%arg0: i32) -> (i32, i32) {
    %c0_i32 = arith.constant 0 : i32
    %c0_i32_0 = arith.constant 0 : i32
    return %arg0, %c0_i32 : i32, i32
  }
  func.func @transform_1(%arg0: i32) -> (i32, i32) {
    %c0_i32 = arith.constant 0 : i32
    %c0_i32_0 = arith.constant 0 : i32
    %c0_i32_1 = arith.constant 0 : i32
    return %c0_i32, %c0_i32_0 : i32, i32
  }
  func.func @transform_2(%arg0: i32) -> (i32, i32) {
    %c0_i32 = arith.constant 0 : i32
    %c0_i32_0 = arith.constant 0 : i32
    %c0_i32_1 = arith.constant 0 : i32
    return %c0_i32, %c0_i32_0 : i32, i32
  }
  func.func @transform_3(%arg0: i32) -> (i32, i32) {
    %c0_i32 = arith.constant 0 : i32
    %c0_i32_0 = arith.constant 0 : i32
    return %arg0, %c0_i32 : i32, i32
  }
}

module attributes {stable_mosaic.version = 11 : i64} {
  func.func @mlp_kernel(%arg0: i32, %arg1: memref<2x256xbf16, #tpu.memory_space<vmem>>, %arg2: memref<256x128xbf16, #tpu.memory_space<vmem>>, %arg3: memref<1x128xf32, #tpu.memory_space<vmem>>, %arg4: memref<128x5xbf16, #tpu.memory_space<vmem>>, %arg5: memref<1x5xf32, #tpu.memory_space<vmem>>, %arg6: memref<2x5xf32, #tpu.memory_space<vmem>>, %arg7: memref<2x128xf32, #tpu.memory_space<vmem>>) attributes {dimension_semantics = [#tpu.dimension_semantics<arbitrary>], iteration_bounds = array<i64: 2>, scalar_prefetch = 0 : i64, scratch_operands = 1 : i64, tpu.core_type = #tpu.core_type<tc>, window_params = [{transform_indices = @transform_0, window_bounds = array<i64: 2, 256>}, {transform_indices = @transform_1, window_bounds = array<i64: 256, 128>}, {pipeline_mode = #tpu.pipeline_mode<synchronous>, transform_indices = @transform_2, window_bounds = array<i64: 1, 128>}, {pipeline_mode = #tpu.pipeline_mode<synchronous>, transform_indices = @transform_3, window_bounds = array<i64: 128, 5>}, {pipeline_mode = #tpu.pipeline_mode<synchronous>, transform_indices = @transform_4, window_bounds = array<i64: 1, 5>}, {pipeline_mode = #tpu.pipeline_mode<synchronous>, transform_indices = @transform_5, window_bounds = array<i64: 2, 5>}]} {
    %c0_i32 = arith.constant 0 : i32
    %0 = arith.cmpi eq, %arg0, %c0_i32 : i32
    %1 = arith.extui %0 : i1 to i32
    %c0_i32_0 = arith.constant 0 : i32
    %2 = arith.cmpi ne, %1, %c0_i32_0 : i32
    scf.if %2 {
      %cst_9 = arith.constant 0.000000e+00 : f32
      %12 = vector.broadcast %cst_9 : f32 to vector<2x128xf32>
      %c0_10 = arith.constant 0 : index
      %c0_11 = arith.constant 0 : index
      %13 = vector.load %arg7[%c0_10, %c0_11] : memref<2x128xf32, #tpu.memory_space<vmem>>, vector<2x128xf32>
      tpu.vector_store %arg7[%c0_10, %c0_11], %12 {strides = array<i32>} : memref<2x128xf32, #tpu.memory_space<vmem>>, vector<2x128xf32>,
    } else {
    }
    %c0 = arith.constant 0 : index
    %c0_1 = arith.constant 0 : index
    %3 = vector.load %arg7[%c0, %c0_1] : memref<2x128xf32, #tpu.memory_space<vmem>>, vector<2x128xf32>
    %c0_2 = arith.constant 0 : index
    %c0_3 = arith.constant 0 : index
    %4 = vector.load %arg1[%c0_2, %c0_3] : memref<2x256xbf16, #tpu.memory_space<vmem>>, vector<2x256xbf16>
    %c0_4 = arith.constant 0 : index
    %c0_5 = arith.constant 0 : index
    %5 = vector.load %arg2[%c0_4, %c0_5] : memref<256x128xbf16, #tpu.memory_space<vmem>>, vector<256x128xbf16>
    %cst = arith.constant dense<0.000000e+00> : vector<2x128xf32>
    %6 = tpu.matmul %4, %5, %cst {dimension_numbers = #tpu.dot_dimension_numbers<[1], [0], [0], [1], [0, 0, 1, 1], [], []>} : vector<2x256xbf16>, vector<256x128xbf16>, vector<2x128xf32> -> vector<2x128xf32>
    %7 = arith.addf %3, %6 : vector<2x128xf32>
    %c0_6 = arith.constant 0 : index
    %c0_7 = arith.constant 0 : index
    %8 = vector.load %arg7[%c0_6, %c0_7] : memref<2x128xf32, #tpu.memory_space<vmem>>, vector<2x128xf32>
    tpu.vector_store %arg7[%c0_6, %c0_7], %7 {strides = array<i32>} : memref<2x128xf32, #tpu.memory_space<vmem>>, vector<2x128xf32>,
    %c1_i32 = arith.constant 1 : i32
    %9 = arith.cmpi eq, %arg0, %c1_i32 : i32
    %10 = arith.extui %9 : i1 to i32
    %c0_i32_8 = arith.constant 0 : i32
    %11 = arith.cmpi ne, %10, %c0_i32_8 : i32
    scf.if %11 {
      %c0_9 = arith.constant 0 : index
      %c0_10 = arith.constant 0 : index
      %12 = vector.load %arg7[%c0_9, %c0_10] : memref<2x128xf32, #tpu.memory_space<vmem>>, vector<2x128xf32>
      %c0_11 = arith.constant 0 : index
      %c0_12 = arith.constant 0 : index
      %13 = vector.load %arg3[%c0_11, %c0_12] : memref<1x128xf32, #tpu.memory_space<vmem>>, vector<1x128xf32>
      %14 = vector.broadcast %13 : vector<1x128xf32> to vector<2x128xf32>
      %15 = arith.addf %12, %14 : vector<2x128xf32>
      %16 = arith.truncf %15 : vector<2x128xf32> to vector<2x128xbf16>
      %c0_13 = arith.constant 0 : index
      %c0_14 = arith.constant 0 : index
      %17 = vector.load %arg4[%c0_13, %c0_14] : memref<128x5xbf16, #tpu.memory_space<vmem>>, vector<128x5xbf16>
      %cst_15 = arith.constant dense<0.000000e+00> : vector<2x5xf32>
      %18 = tpu.matmul %16, %17, %cst_15 {dimension_numbers = #tpu.dot_dimension_numbers<[1], [0], [0], [1], [0, 0, 1, 1], [], []>} : vector<2x128xbf16>, vector<128x5xbf16>, vector<2x5xf32> -> vector<2x5xf32>
      %c0_16 = arith.constant 0 : index
      %c0_17 = arith.constant 0 : index
      %19 = vector.load %arg5[%c0_16, %c0_17] : memref<1x5xf32, #tpu.memory_space<vmem>>, vector<1x5xf32>
      %20 = vector.broadcast %19 : vector<1x5xf32> to vector<2x5xf32>
      %21 = arith.addf %18, %20 : vector<2x5xf32>
      %c0_18 = arith.constant 0 : index
      %c0_19 = arith.constant 0 : index
      %22 = vector.load %arg6[%c0_18, %c0_19] : memref<2x5xf32, #tpu.memory_space<vmem>>, vector<2x5xf32>
      tpu.vector_store %arg6[%c0_18, %c0_19], %21 {strides = array<i32>} : memref<2x5xf32, #tpu.memory_space<vmem>>, vector<2x5xf32>,
    } else {
    }
    return
  }
  func.func @transform_0(%arg0: i32) -> (i32, i32) {
    %c0_i32 = arith.constant 0 : i32
    %c0_i32_0 = arith.constant 0 : i32
    return %c0_i32, %arg0 : i32, i32
  }
  func.func @transform_1(%arg0: i32) -> (i32, i32) {
    %c0_i32 = arith.constant 0 : i32
    %c0_i32_0 = arith.constant 0 : i32
    return %arg0, %c0_i32 : i32, i32
  }
  func.func @transform_2(%arg0: i32) -> (i32, i32) {
    %c0_i32 = arith.constant 0 : i32
    %c0_i32_0 = arith.constant 0 : i32
    %c0_i32_1 = arith.constant 0 : i32
    return %c0_i32, %c0_i32_0 : i32, i32
  }
  func.func @transform_3(%arg0: i32) -> (i32, i32) {
    %c0_i32 = arith.constant 0 : i32
    %c0_i32_0 = arith.constant 0 : i32
    %c0_i32_1 = arith.constant 0 : i32
    return %c0_i32, %c0_i32_0 : i32, i32
  }
  func.func @transform_4(%arg0: i32) -> (i32, i32) {
    %c0_i32 = arith.constant 0 : i32
    %c0_i32_0 = arith.constant 0 : i32
    %c0_i32_1 = arith.constant 0 : i32
    return %c0_i32, %c0_i32_0 : i32, i32
  }
  func.func @transform_5(%arg0: i32) -> (i32, i32) {
    %c0_i32 = arith.constant 0 : i32
    %c0_i32_0 = arith.constant 0 : i32
    %c0_i32_1 = arith.constant 0 : i32
    return %c0_i32, %c0_i32_0 : i32, i32
  }
}

</mosaic_0001>

<llo_original>
// kernel: encoder_model_forward.4
$region0: #{encoder_model_forward.4}
  #allocation0 [shape = 'u32[]', space=smem, size = 0x4, offset = 0x4, fixed_abs, tag = 'smem constant byte address 0x4 - core index']
  #allocation1 [shape = 'u32[144,128]{1,0:T(1,128)}', space=vmem, size = 0x12000, scoped, tag = 'internal scratch']
  %s0 = inlined_call_operand.vmem [shape: bf16[512,27], index: 0, kind: input, shape index: {}]
  %s1 = inlined_call_operand.vmem [shape: bf16[27,32], index: 1, kind: input, shape index: {}]
  %s2 = inlined_call_operand.vmem [shape: f32[1,32], index: 2, kind: input, shape index: {}]
  %s3 = inlined_call_operand.vmem [shape: bf16[128,32], index: 3, kind: output, shape index: {}]
  %s4 = sld [smem:[#allocation0]]
  $region45: #{encoder_model_forward.4} parent=0
    _
  %s6 = ssub.s32 1, %s4
  %s7 = scalar_select 0, %s6, %s4
  loop: start=0, step=1, limit=4
  $region2: #{encoder_model_forward.4} parent=0 // loop_pre_header
    _
  $region3: #{encoder_model_forward.4} parent=0 // loop_header
    %s9 = sphi 0, %s13
    %p10 = scmp.ge.s32.totalorder %s9, 4
    %s19 = sphi 0, %s21
    %s22 = sphi 0, %s19
    %s23 = sphi 0, %s22
    %s39 = sphi 0, %s23
    %s43 = sphi 0, %s43
    %s45 = sphi 0, %s43
    %s46 = sphi 0, %s45
    %s60 = sphi 0, %s46
    %s64 = sphi 0, %s64
    %s66 = sphi 0, %s64
    %s67 = sphi 0, %s66
    %s81 = sphi 0, %s67
    %s87 = sphi 0, %s89
    %s90 = sphi 0, %s87
    %s91 = sphi 0, %s90
    %s107 = sphi 0, %s91
  $region4: #{encoder_model_forward.4} parent=0 // loop_header_branch
    %12 = sbr.rel (%p10) target = $region8
  $region5: #{encoder_model_forward.4} parent=0 // loop_body
    %s14 = ssub.s32 %s9, 1
    %s15 = ssub.s32 %s9, 2
    %s16 = sadd.s32 %s9, 1
    %s17 = ssub.s32 %s9, %s16
    %p18 = scmp.eq.s32.totalorder %s17, 0
    %s20 = sadd.s32 %s19, 1
    %s21 = scalar_select %p18, %s19, %s20
    %p24 = pneg %p18
    %p25 = scmp.eq.s32.totalorder %s9, 1
    %p26 = por %p24, %p25
    %p27 = scmp.ne.s32.totalorder %s19, %s22
    %p28 = scmp.eq.s32.totalorder %s9, 0
    %p29 = por %p27, %p28
    %p30 = scmp.ne.s32.totalorder %s19, %s22
    %p31 = scmp.eq.s32.totalorder %s14, 1
    %p32 = por %p30, %p31
    %p33 = scmp.ne.s32.totalorder %s22, %s23
    %p34 = scmp.eq.s32.totalorder %s14, 0
    %p35 = por %p33, %p34
    %p36 = scmp.ne.s32.totalorder %s22, %s23
    %p37 = scmp.eq.s32.totalorder %s15, 1
    %p38 = por %p36, %p37
    %p40 = scmp.ne.s32.totalorder %s23, %s39
    %p41 = scmp.eq.s32.totalorder %s15, 0
    %p42 = por %p40, %p41
    %s44 = sadd.s32 %s43, 1
    %p47 = scmp.eq.s32.totalorder %s9, 1
    %p48 = scmp.ne.s32.totalorder %s43, %s45
    %p49 = scmp.eq.s32.totalorder %s9, 0
    %p50 = por %p48, %p49
    %p51 = scmp.ne.s32.totalorder %s43, %s45
    %p52 = scmp.eq.s32.totalorder %s14, 1
    %p53 = por %p51, %p52
    %p54 = scmp.ne.s32.totalorder %s45, %s46
    %p55 = scmp.eq.s32.totalorder %s14, 0
    %p56 = por %p54, %p55
    %p57 = scmp.ne.s32.totalorder %s45, %s46
    %p58 = scmp.eq.s32.totalorder %s15, 1
    %p59 = por %p57, %p58
    %p61 = scmp.ne.s32.totalorder %s46, %s60
    %p62 = scmp.eq.s32.totalorder %s15, 0
    %p63 = por %p61, %p62
    %s65 = sadd.s32 %s64, 1
    %p68 = scmp.eq.s32.totalorder %s9, 1
    %p69 = scmp.ne.s32.totalorder %s64, %s66
    %p70 = scmp.eq.s32.totalorder %s9, 0
    %p71 = por %p69, %p70
    %p72 = scmp.ne.s32.totalorder %s64, %s66
    %p73 = scmp.eq.s32.totalorder %s14, 1
    %p74 = por %p72, %p73
    %p75 = scmp.ne.s32.totalorder %s66, %s67
    %p76 = scmp.eq.s32.totalorder %s14, 0
    %p77 = por %p75, %p76
    %p78 = scmp.ne.s32.totalorder %s66, %s67
    %p79 = scmp.eq.s32.totalorder %s15, 1
    %p80 = por %p78, %p79
    %p82 = scmp.ne.s32.totalorder %s67, %s81
    %p83 = scmp.eq.s32.totalorder %s15, 0
    %p84 = por %p82, %p83
    %s85 = ssub.s32 %s9, %s16
    %p86 = scmp.eq.s32.totalorder %s85, 0
    %s88 = sadd.s32 %s87, 1
    %s89 = scalar_select %p86, %s87, %s88
    %p92 = pneg %p86
    %p93 = scmp.eq.s32.totalorder %s9, 1
    %p94 = por %p92, %p93
    %p95 = scmp.ne.s32.totalorder %s87, %s90
    %p96 = scmp.eq.s32.totalorder %s9, 0
    %p97 = por %p95, %p96
    %p98 = scmp.ne.s32.totalorder %s87, %s90
    %p99 = scmp.eq.s32.totalorder %s14, 1
    %p100 = por %p98, %p99
    %p101 = scmp.ne.s32.totalorder %s90, %s91
    %p102 = scmp.eq.s32.totalorder %s14, 0
    %p103 = por %p101, %p102
    %p104 = scmp.ne.s32.totalorder %s90, %s91
    %p105 = scmp.eq.s32.totalorder %s15, 1
    %p106 = por %p104, %p105
    %p108 = scmp.ne.s32.totalorder %s91, %s107
    %p109 = scmp.eq.s32.totalorder %s15, 0
    %p110 = por %p108, %p109
    %p111 = scmp.le.s32.totalorder 1, %s9
    %p112 = scmp.lt.s32.totalorder %s9, 3
    %p113 = pnand %p111, %p112
    %p114 = pneg %p113
    // Predicated region
    $region9: #{encoder_model_forward.4} parent=5 // pred_check
      _
    $region10: #{encoder_model_forward.4} parent=5 // pred_check_branch
      %116 = sbr.rel (%p113) target = $region12
    $region11: #{encoder_model_forward.4} parent=5 // pred_region
      %s117 = ssub.s32 %s9, 1
      // Predicated region
      $region13: #{encoder_model_forward.4} parent=11 // pred_check
        %p118 = pneg %p56
      $region14: #{encoder_model_forward.4} parent=11 // pred_check_branch
        %120 = sbr.rel (%p118) target = $region16
      $region15: #{encoder_model_forward.4} parent=11 // pred_region
        _
      $region16: #{encoder_model_forward.4} parent=11 // pred_fallthru
        _
      // Predicated region
      $region17: #{encoder_model_forward.4} parent=11 // pred_check
        %p121 = pneg %p77
      $region18: #{encoder_model_forward.4} parent=11 // pred_check_branch
        %123 = sbr.rel (%p121) target = $region20
      $region19: #{encoder_model_forward.4} parent=11 // pred_region
        _
      $region20: #{encoder_model_forward.4} parent=11 // pred_fallthru
        _
    $region12: #{encoder_model_forward.4} parent=5 // pred_fallthru
      _
    %p124 = scmp.lt.s32.totalorder %s9, 2
    // Predicated region
    $region21: #{encoder_model_forward.4} parent=5 // pred_check
      %p125 = pneg %p124
    $region22: #{encoder_model_forward.4} parent=5 // pred_check_branch
      %127 = sbr.rel (%p125) target = $region24
    $region23: #{encoder_model_forward.4} parent=5 // pred_region
      // Predicated region
      $region25: #{encoder_model_forward.4} parent=23 // pred_check
        %p128 = pneg %p29
      $region26: #{encoder_model_forward.4} parent=23 // pred_check_branch
        %130 = sbr.rel (%p128) target = $region28
      $region27: #{encoder_model_forward.4} parent=23 // pred_region
        %s131 = smul.u32 32, %s9
        %p132 = scmp.lt.s32.totalorder %s131, 63
        %s133 = scalar_select %p132, %s131, 63
        %s134 = smul.addr %s133, 4
        %s135 = scalar_lea.vmem %s0, %s134
        %s136 = smul.u32 32, %s9
      $region28: #{encoder_model_forward.4} parent=23 // pred_fallthru
        _
    $region24: #{encoder_model_forward.4} parent=5 // pred_fallthru
      _
    %p137 = scmp.le.s32.totalorder 1, %s9
    %p138 = scmp.lt.s32.totalorder %s9, 3
    %p139 = pnand %p137, %p138
    %p140 = pneg %p139
    // Predicated region
    $region29: #{encoder_model_forward.4} parent=5 // pred_check
      _
    $region30: #{encoder_model_forward.4} parent=5 // pred_check_branch
      %142 = sbr.rel (%p139) target = $region32
    $region31: #{encoder_model_forward.4} parent=5 // pred_region
      %s143 = ssub.s32 %s9, 1
      %s144 = smul.u32 32, %s14
      %p145 = scmp.lt.s32.totalorder %s144, 63
      %s146 = scalar_select %p145, %s144, 63
      %s147 = smul.addr %s146, 4
      %s148 = scalar_lea.vmem %s0, %s147
      %p149 = pneg %p35
      %p150 = pneg %p32
      %p151 = pneg %p56
      %p152 = pneg %p53
      %p153 = pneg %p77
      %p154 = pneg %p74
      %p155 = pneg %p103
      %p156 = pneg %p100
      %s157 = smul.u32 8, %s14
      %p158 = scmp.lt.s32.totalorder %s157, 15
      %s159 = scalar_select %p158, %s157, 15
      %s160 = smul.addr %s159, 4
      %s161 = scalar_lea.vmem %s3, %s160
      %s162 = smul.u32 32, %s14
      %p163 = scmp.lt.s32.totalorder %s162, 63
      %s164 = scalar_select %p163, %s162, 63
      %s165 = smul.addr %s164, 4
      %s166 = scalar_lea.vmem %s0, %s165
      %s167 = smul.u32 32, %s14
      %s168 = smul.u32 8, %s14
      %p169 = scmp.lt.s32.totalorder %s168, 15
      %s170 = scalar_select %p169, %s168, 15
      %s171 = smul.addr %s170, 4
      %s172 = scalar_lea.vmem %s3, %s171
      %s173 = smul.u32 8, %s14
      %v175 = vld [vmem:[%s166] sm:$0xf]
      %v176 = vld [vmem:[%s166 + $0x4] sm:$0xf]
      %v177 = vld [vmem:[%s166 + $0x8] sm:$0xf]
      %v178 = vld [vmem:[%s166 + $0xc] sm:$0xf]
      %v179 = vld [vmem:[%s166 + $0x10] sm:$0xf]
      %v180 = vld [vmem:[%s166 + $0x14] sm:$0xf]
      %v181 = vld [vmem:[%s166 + $0x18] sm:$0xf]
      %v182 = vld [vmem:[%s166 + $0x1c] sm:$0xf]
      %v183 = vld [vmem:[%s166 + $0x20] sm:$0xf]
      %v184 = vld [vmem:[%s166 + $0x24] sm:$0xf]
      %v185 = vld [vmem:[%s166 + $0x28] sm:$0xf]
      %v186 = vld [vmem:[%s166 + $0x2c] sm:$0xf]
      %v187 = vld [vmem:[%s166 + $0x30] sm:$0xf]
      %v188 = vld [vmem:[%s166 + $0x34] sm:$0xf]
      %v189 = vld [vmem:[%s166 + $0x38] sm:$0xf]
      %v190 = vld [vmem:[%s166 + $0x3c] sm:$0xf]
      %v191 = vld [vmem:[%s166 + $0x40] sm:$0xf]
      %v192 = vld [vmem:[%s166 + $0x44] sm:$0xf]
      %v193 = vld [vmem:[%s166 + $0x48] sm:$0xf]
      %v194 = vld [vmem:[%s166 + $0x4c] sm:$0xf]
      %v195 = vld [vmem:[%s166 + $0x50] sm:$0xf]
      %v196 = vld [vmem:[%s166 + $0x54] sm:$0xf]
      %v197 = vld [vmem:[%s166 + $0x58] sm:$0xf]
      %v198 = vld [vmem:[%s166 + $0x5c] sm:$0xf]
      %v199 = vld [vmem:[%s166 + $0x60] sm:$0xf]
      %v200 = vld [vmem:[%s166 + $0x64] sm:$0xf]
      %v201 = vld [vmem:[%s166 + $0x68] sm:$0xf]
      %v202 = vld [vmem:[%s166 + $0x6c] sm:$0xf]
      %v203 = vld [vmem:[%s166 + $0x70] sm:$0xf]
      %v204 = vld [vmem:[%s166 + $0x74] sm:$0xf]
      %v205 = vld [vmem:[%s166 + $0x78] sm:$0xf]
      %v206 = vld [vmem:[%s166 + $0x7c] sm:$0xf]
      %v207 = vld [vmem:[%s1] sm:$0xf]
      %v208 = vld [vmem:[%s1 + $0x4] sm:$0xf]
      %v209 = vld [vmem:[%s1 + $0x8] sm:$0xf]
      %v210 = vld [vmem:[%s1 + $0xc] sm:$0x3]
      %v243 = vunpack.c.l.b16 %v175
      %v244 = vunpack.c.l.b16 %v176
      %v245 = vunpack.c.l.b16 %v177
      %v246 = vunpack.c.l.b16 %v178
      %v247 = vunpack.c.l.b16 %v179
      %v248 = vunpack.c.l.b16 %v180
      %v249 = vunpack.c.l.b16 %v181
      %v250 = vunpack.c.l.b16 %v182
      %v251 = vunpack.c.l.b16 %v183
      %v252 = vunpack.c.l.b16 %v184
      %v253 = vunpack.c.l.b16 %v185
      %v254 = vunpack.c.l.b16 %v186
      %v255 = vunpack.c.l.b16 %v187
      %v256 = vunpack.c.l.b16 %v188
      %v257 = vunpack.c.l.b16 %v189
      %v258 = vunpack.c.l.b16 %v190
      %v259 = vunpack.c.l.b16 %v191
      %v260 = vunpack.c.l.b16 %v192
      %v261 = vunpack.c.l.b16 %v193
      %v262 = vunpack.c.l.b16 %v194
      %v263 = vunpack.c.l.b16 %v195
      %v264 = vunpack.c.l.b16 %v196
      %v265 = vunpack.c.l.b16 %v197
      %v266 = vunpack.c.l.b16 %v198
      %v267 = vunpack.c.l.b16 %v199
      %v268 = vunpack.c.l.b16 %v200
      %v269 = vunpack.c.l.b16 %v201
      %v270 = vunpack.c.l.b16 %v202
      %v271 = vunpack.c.l.b16 %v203
      %v272 = vunpack.c.l.b16 %v204
      %v273 = vunpack.c.l.b16 %v205
      %v274 = vunpack.c.l.b16 %v206
      %v275 = vpack.c.b16 %v244, %v243
      %v276 = vpack.c.b16 %v246, %v245
      %v277 = vpack.c.b16 %v248, %v247
      %v278 = vpack.c.b16 %v250, %v249
      %v279 = vpack.c.b16 %v252, %v251
      %v280 = vpack.c.b16 %v254, %v253
      %v281 = vpack.c.b16 %v256, %v255
      %v282 = vpack.c.b16 %v258, %v257
      %v283 = vpack.c.b16 %v260, %v259
      %v284 = vpack.c.b16 %v262, %v261
      %v285 = vpack.c.b16 %v264, %v263
      %v286 = vpack.c.b16 %v266, %v265
      %v287 = vpack.c.b16 %v268, %v267
      %v288 = vpack.c.b16 %v270, %v269
      %v289 = vpack.c.b16 %v272, %v271
      %v290 = vpack.c.b16 %v274, %v273
      %v295 = vunpack.c.l.b16 %v207
      %v296 = vunpack.c.l.b16 %v208
      %v297 = vunpack.c.l.b16 %v209
      %v298 = vunpack.c.l.b16 %v210
      %v299 = vpack.c.b16 %v296, %v295
      %v300 = vpack.c.b16 %v298, %v297
      %vm302 = vcmask 220160
      %v304 = vsel %vm302, %v275, 0
      %v307 = vsel %vm302, %v276, 0
      %v310 = vsel %vm302, %v277, 0
      %v313 = vsel %vm302, %v278, 0
      %v316 = vsel %vm302, %v279, 0
      %v319 = vsel %vm302, %v280, 0
      %v322 = vsel %vm302, %v281, 0
      %v325 = vsel %vm302, %v282, 0
      %v328 = vsel %vm302, %v283, 0
      %v331 = vsel %vm302, %v284, 0
      %v334 = vsel %vm302, %v285, 0
      %v337 = vsel %vm302, %v286, 0
      %v340 = vsel %vm302, %v287, 0
      %v343 = vsel %vm302, %v288, 0
      %v346 = vsel %vm302, %v289, 0
      %v349 = vsel %vm302, %v290, 0
      %vm351 = vcmask 1044480
      %vm352 = vcmask 1045504
      %v353 = vsel %vm351, 4294967295, 65535
      %v354 = vsel %vm352, %v353, 0
      %v356 = vand.u32 %v300, %v354
      %358 = vmatprep.subr.bf16.mxu0 0
      %359 = vmatpush1.bf16.msra.mxu0 %v299
      %360 = vmatprep.subr.bf16.mxu0 0
      %361 = vmatpush1.bf16.msra.mxu0 %v356
      %362 = vmatprep.subr.bf16.mxu0 0
      %363 = vmatpush1.bf16.msra.mxu0 0
      %364 = vmatprep.subr.bf16.mxu0 0
      %365 = vmatpush1.bf16.msra.mxu0 0
      %366 = vmatprep.subr.bf16.mxu0 0
      %367 = vmatpush1.bf16.msra.mxu0 0
      %368 = vmatprep.subr.bf16.mxu0 0
      %369 = vmatpush1.bf16.msra.mxu0 0
      %370 = vmatprep.subr.bf16.mxu0 0
      %371 = vmatpush1.bf16.msra.mxu0 0
      %372 = vmatprep.subr.bf16.mxu0 0
      %373 = vmatpush1.bf16.msra.mxu0 0
      %374 = vmatprep.subr.bf16.mxu0 0
      %375 = vmatpush1.bf16.msra.mxu0 0
      %376 = vmatprep.subr.bf16.mxu0 0
      %377 = vmatpush1.bf16.msra.mxu0 0
      %378 = vmatprep.subr.bf16.mxu0 0
      %379 = vmatpush1.bf16.msra.mxu0 0
      %380 = vmatprep.subr.bf16.mxu0 0
      %381 = vmatpush1.bf16.msra.mxu0 0
      %382 = vmatprep.subr.bf16.mxu0 0
      %383 = vmatpush1.bf16.msra.mxu0 0
      %384 = vmatprep.subr.bf16.mxu0 0
      %385 = vmatpush1.bf16.msra.mxu0 0
      %386 = vmatprep.subr.bf16.mxu0 0
      %387 = vmatpush1.bf16.msra.mxu0 0
      %388 = vmatprep.subr.bf16.mxu0 0
      %389 = vmatpush1.bf16.msra.mxu0 0
      %390 = vmatprep.mubr.bf16.mxu0 0
      %391 = vmatmul.mubr.bf16.gmra.mrb[0].mxu0 %v304
      %v392 = vpop.f32.mrb[0].mxu0
      %v393 = vadd.f32 0.0, %v392
      %v394 = vpop.f32.mrb[0].mxu0
      %v395 = vpop.f32.mrb[0].mxu0
      %v396 = vadd.f32 0.0, %v395
      %v397 = vpop.f32.mrb[0].mxu0
      %398 = vmatprep.mubr.bf16.mxu0 0
      %399 = vmatmul.mubr.bf16.gmra.mrb[0].mxu0 %v307
      %v400 = vpop.f32.mrb[0].mxu0
      %v401 = vadd.f32 0.0, %v400
      %v402 = vpop.f32.mrb[0].mxu0
      %v403 = vpop.f32.mrb[0].mxu0
      %v404 = vadd.f32 0.0, %v403
      %v405 = vpop.f32.mrb[0].mxu0
      %406 = vmatprep.mubr.bf16.mxu0 0
      %407 = vmatmul.mubr.bf16.gmra.mrb[0].mxu0 %v310
      %v408 = vpop.f32.mrb[0].mxu0
      %v409 = vadd.f32 0.0, %v408
      %v410 = vpop.f32.mrb[0].mxu0
      %v411 = vpop.f32.mrb[0].mxu0
      %v412 = vadd.f32 0.0, %v411
      %v413 = vpop.f32.mrb[0].mxu0
      %414 = vmatprep.mubr.bf16.mxu0 0
      %415 = vmatmul.mubr.bf16.gmra.mrb[0].mxu0 %v313
      %v416 = vpop.f32.mrb[0].mxu0
      %v417 = vadd.f32 0.0, %v416
      %v418 = vpop.f32.mrb[0].mxu0
      %v419 = vpop.f32.mrb[0].mxu0
      %v420 = vadd.f32 0.0, %v419
      %v421 = vpop.f32.mrb[0].mxu0
      %422 = vmatprep.mubr.bf16.mxu0 0
      %423 = vmatmul.mubr.bf16.gmra.mrb[0].mxu0 %v316
      %v424 = vpop.f32.mrb[0].mxu0
      %v425 = vadd.f32 0.0, %v424
      %v426 = vpop.f32.mrb[0].mxu0
      %v427 = vpop.f32.mrb[0].mxu0
      %v428 = vadd.f32 0.0, %v427
      %v429 = vpop.f32.mrb[0].mxu0
      %430 = vmatprep.mubr.bf16.mxu0 0
      %431 = vmatmul.mubr.bf16.gmra.mrb[0].mxu0 %v319
      %v432 = vpop.f32.mrb[0].mxu0
      %v433 = vadd.f32 0.0, %v432
      %v434 = vpop.f32.mrb[0].mxu0
      %v435 = vpop.f32.mrb[0].mxu0
      %v436 = vadd.f32 0.0, %v435
      %v437 = vpop.f32.mrb[0].mxu0
      %438 = vmatprep.mubr.bf16.mxu0 0
      %439 = vmatmul.mubr.bf16.gmra.mrb[0].mxu0 %v322
      %v440 = vpop.f32.mrb[0].mxu0
      %v441 = vadd.f32 0.0, %v440
      %v442 = vpop.f32.mrb[0].mxu0
      %v443 = vpop.f32.mrb[0].mxu0
      %v444 = vadd.f32 0.0, %v443
      %v445 = vpop.f32.mrb[0].mxu0
      %446 = vmatprep.mubr.bf16.mxu0 0
      %447 = vmatmul.mubr.bf16.gmra.mrb[0].mxu0 %v325
      %v448 = vpop.f32.mrb[0].mxu0
      %v449 = vadd.f32 0.0, %v448
      %v450 = vpop.f32.mrb[0].mxu0
      %v451 = vpop.f32.mrb[0].mxu0
      %v452 = vadd.f32 0.0, %v451
      %v453 = vpop.f32.mrb[0].mxu0
      %454 = vmatprep.mubr.bf16.mxu0 0
      %455 = vmatmul.mubr.bf16.gmra.mrb[0].mxu0 %v328
      %v456 = vpop.f32.mrb[0].mxu0
      %v457 = vadd.f32 0.0, %v456
      %v458 = vpop.f32.mrb[0].mxu0
      %v459 = vpop.f32.mrb[0].mxu0
      %v460 = vadd.f32 0.0, %v459
      %v461 = vpop.f32.mrb[0].mxu0
      %462 = vmatprep.mubr.bf16.mxu0 0
      %463 = vmatmul.mubr.bf16.gmra.mrb[0].mxu0 %v331
      %v464 = vpop.f32.mrb[0].mxu0
      %v465 = vadd.f32 0.0, %v464
      %v466 = vpop.f32.mrb[0].mxu0
      %v467 = vpop.f32.mrb[0].mxu0
      %v468 = vadd.f32 0.0, %v467
      %v469 = vpop.f32.mrb[0].mxu0
      %470 = vmatprep.mubr.bf16.mxu0 0
      %471 = vmatmul.mubr.bf16.gmra.mrb[0].mxu0 %v334
      %v472 = vpop.f32.mrb[0].mxu0
      %v473 = vadd.f32 0.0, %v472
      %v474 = vpop.f32.mrb[0].mxu0
      %v475 = vpop.f32.mrb[0].mxu0
      %v476 = vadd.f32 0.0, %v475
      %v477 = vpop.f32.mrb[0].mxu0
      %478 = vmatprep.mubr.bf16.mxu0 0
      %479 = vmatmul.mubr.bf16.gmra.mrb[0].mxu0 %v337
      %v480 = vpop.f32.mrb[0].mxu0
      %v481 = vadd.f32 0.0, %v480
      %v482 = vpop.f32.mrb[0].mxu0
      %v483 = vpop.f32.mrb[0].mxu0
      %v484 = vadd.f32 0.0, %v483
      %v485 = vpop.f32.mrb[0].mxu0
      %486 = vmatprep.mubr.bf16.mxu0 0
      %487 = vmatmul.mubr.bf16.gmra.mrb[0].mxu0 %v340
      %v488 = vpop.f32.mrb[0].mxu0
      %v489 = vadd.f32 0.0, %v488
      %v490 = vpop.f32.mrb[0].mxu0
      %v491 = vpop.f32.mrb[0].mxu0
      %v492 = vadd.f32 0.0, %v491
      %v493 = vpop.f32.mrb[0].mxu0
      %494 = vmatprep.mubr.bf16.mxu0 0
      %495 = vmatmul.mubr.bf16.gmra.mrb[0].mxu0 %v343
      %v496 = vpop.f32.mrb[0].mxu0
      %v497 = vadd.f32 0.0, %v496
      %v498 = vpop.f32.mrb[0].mxu0
      %v499 = vpop.f32.mrb[0].mxu0
      %v500 = vadd.f32 0.0, %v499
      %v501 = vpop.f32.mrb[0].mxu0
      %502 = vmatprep.mubr.bf16.mxu0 0
      %503 = vmatmul.mubr.bf16.gmra.mrb[0].mxu0 %v346
      %v504 = vpop.f32.mrb[0].mxu0
      %v505 = vadd.f32 0.0, %v504
      %v506 = vpop.f32.mrb[0].mxu0
      %v507 = vpop.f32.mrb[0].mxu0
      %v508 = vadd.f32 0.0, %v507
      %v509 = vpop.f32.mrb[0].mxu0
      %510 = vmatprep.mubr.bf16.mxu0 0
      %511 = vmatmul.mubr.bf16.gmra.mrb[0].mxu0 %v349
      %v512 = vpop.f32.mrb[0].mxu0
      %v513 = vadd.f32 0.0, %v512
      %v514 = vpop.f32.mrb[0].mxu0
      %v515 = vpop.f32.mrb[0].mxu0
      %v516 = vadd.f32 0.0, %v515
      %v517 = vpop.f32.mrb[0].mxu0
      %518 = vdwg.mxu0
      %v519 = vmax.f32 %v393, %v425
      %v520 = vmax.f32 %v396, %v428
      %v521 = vmax.f32 %v401, %v433
      %v522 = vmax.f32 %v404, %v436
      %v523 = vmax.f32 %v409, %v441
      %v524 = vmax.f32 %v412, %v444
      %v525 = vmax.f32 %v417, %v449
      %v526 = vmax.f32 %v420, %v452
      %v527 = vmax.f32 %v457, %v489
      %v528 = vmax.f32 %v460, %v492
      %v529 = vmax.f32 %v465, %v497
      %v530 = vmax.f32 %v468, %v500
      %v531 = vmax.f32 %v473, %v505
      %v532 = vmax.f32 %v476, %v508
      %v533 = vmax.f32 %v481, %v513
      %v534 = vmax.f32 %v484, %v516
      %v535 = vmax.f32 %v519, %v527
      %v536 = vmax.f32 %v520, %v528
      %v537 = vmax.f32 %v521, %v529
      %v538 = vmax.f32 %v522, %v530
      %v539 = vmax.f32 %v523, %v531
      %v540 = vmax.f32 %v524, %v532
      %v541 = vmax.f32 %v525, %v533
      %v542 = vmax.f32 %v526, %v534
      %v543 = vld [vmem:[%s2] sm:$0x1]
      %v545 = vlaneseq
      %v546 = vshrl.u32 %v545, 7
      %v547 = vsub.s32 0, %v546
      %v548 = vrot.slane %v543, %v547
      %v550 = vadd.f32 %v535, %v548
      %v551 = vadd.f32 %v536, %v548
      %v552 = vadd.f32 %v537, %v548
      %v553 = vadd.f32 %v538, %v548
      %v554 = vadd.f32 %v539, %v548
      %v555 = vadd.f32 %v540, %v548
      %v556 = vadd.f32 %v541, %v548
      %v557 = vadd.f32 %v542, %v548
      %v558 = vmax.f32 %v550, 0.0
      %v559 = vmax.f32 %v551, 0.0
      %v560 = vmax.f32 %v552, 0.0
      %v561 = vmax.f32 %v553, 0.0
      %v562 = vmax.f32 %v554, 0.0
      %v563 = vmax.f32 %v555, 0.0
      %v564 = vmax.f32 %v556, 0.0
      %v565 = vmax.f32 %v557, 0.0
      %v566 = vpack.c.bf16 %v559, %v558
      %v567 = vpack.c.bf16 %v561, %v560
      %v568 = vpack.c.bf16 %v563, %v562
      %v569 = vpack.c.bf16 %v565, %v564
      %v574 = vunpack.c.l.b16 %v566
      %v575 = vunpack.c.h.b16 %v566
      %v576 = vunpack.c.l.b16 %v567
      %v577 = vunpack.c.h.b16 %v567
      %v578 = vunpack.c.l.b16 %v568
      %v579 = vunpack.c.h.b16 %v568
      %v580 = vunpack.c.l.b16 %v569
      %v581 = vunpack.c.h.b16 %v569
      %v582 = vpack.c.b16 %v574, %v574
      %v583 = vpack.c.b16 %v575, %v575
      %v584 = vpack.c.b16 %v576, %v576
      %v585 = vpack.c.b16 %v577, %v577
      %v586 = vpack.c.b16 %v578, %v578
      %v587 = vpack.c.b16 %v579, %v579
      %v588 = vpack.c.b16 %v580, %v580
      %v589 = vpack.c.b16 %v581, %v581
      %vm598 = vcmask 257024
      %599 = vst.msk [vmem:[%s172] sm:$0xf] %vm598, %v582
      %600 = vst.msk [vmem:[%s172 + $0x4] sm:$0xf] %vm598, %v583
      %601 = vst.msk [vmem:[%s172 + $0x8] sm:$0xf] %vm598, %v584
      %602 = vst.msk [vmem:[%s172 + $0xc] sm:$0xf] %vm598, %v585
      %603 = vst.msk [vmem:[%s172 + $0x10] sm:$0xf] %vm598, %v586
      %604 = vst.msk [vmem:[%s172 + $0x14] sm:$0xf] %vm598, %v587
      %605 = vst.msk [vmem:[%s172 + $0x18] sm:$0xf] %vm598, %v588
      %606 = vst.msk [vmem:[%s172 + $0x1c] sm:$0xf] %vm598, %v589
      %s607 = smul.u32 8, %s14
      %p608 = scmp.lt.s32.totalorder %s607, 15
      %s609 = scalar_select %p608, %s607, 15
      %s610 = smul.addr %s609, 4
      %s611 = scalar_lea.vmem %s3, %s610
      // Predicated region
      $region33: #{encoder_model_forward.4} parent=31 // pred_check
        %p612 = pneg %p100
      $region34: #{encoder_model_forward.4} parent=31 // pred_check_branch
        %614 = sbr.rel (%p612) target = $region36
      $region35: #{encoder_model_forward.4} parent=31 // pred_region
        %s615 = smul.u32 8, %s14
      $region36: #{encoder_model_forward.4} parent=31 // pred_fallthru
        _
    $region32: #{encoder_model_forward.4} parent=5 // pred_fallthru
      _
    %p616 = scmp.le.s32.totalorder 2, %s9
    // Predicated region
    $region37: #{encoder_model_forward.4} parent=5 // pred_check
      %p617 = pneg %p616
    $region38: #{encoder_model_forward.4} parent=5 // pred_check_branch
      %619 = sbr.rel (%p617) target = $region40
    $region39: #{encoder_model_forward.4} parent=5 // pred_region
      %s620 = ssub.s32 %s9, 2
      // Predicated region
      $region41: #{encoder_model_forward.4} parent=39 // pred_check
        %p621 = pneg %p106
      $region42: #{encoder_model_forward.4} parent=39 // pred_check_branch
        %623 = sbr.rel (%p621) target = $region44
      $region43: #{encoder_model_forward.4} parent=39 // pred_region
        %s624 = smul.u32 8, %s15
        %p625 = scmp.lt.s32.totalorder %s624, 15
        %s626 = scalar_select %p625, %s624, 15
        %s627 = smul.addr %s626, 4
        %s628 = scalar_lea.vmem %s3, %s627
      $region44: #{encoder_model_forward.4} parent=39 // pred_fallthru
        _
    $region40: #{encoder_model_forward.4} parent=5 // pred_fallthru
      _
  $region6: #{encoder_model_forward.4} parent=0 // loop_footer
    %s13 = sadd.s32 1, %s9
  $region7: #{encoder_model_forward.4} parent=0 // loop_footer_branch
    %8 = sbr.rel target = $region3
  $region8: #{encoder_model_forward.4} parent=0 // loop_exit
    _

// kernel: encoder_model_forward.5
$region0: #{encoder_model_forward.5}
  #allocation0 [shape = 'u32[]', space=smem, size = 0x4, offset = 0x4, fixed_abs, tag = 'smem constant byte address 0x4 - core index']
  #allocation1 [shape = 'u32[144,128]{1,0:T(1,128)}', space=vmem, size = 0x12000, scoped, tag = 'internal scratch']
  %s0 = inlined_call_operand.vmem [shape: bf16[128,288], index: 0, kind: input, shape index: {}]
  %s1 = inlined_call_operand.vmem [shape: bf16[288,64], index: 1, kind: input, shape index: {}]
  %s2 = inlined_call_operand.vmem [shape: f32[1,64], index: 2, kind: input, shape index: {}]
  %s3 = inlined_call_operand.vmem [shape: bf16[32,64], index: 3, kind: output, shape index: {}]
  %s4 = sld [smem:[#allocation0]]
  $region45: #{encoder_model_forward.5} parent=0
    _
  %s6 = ssub.s32 1, %s4
  %s7 = scalar_select 0, %s6, %s4
  loop: start=0, step=1, limit=4
  $region2: #{encoder_model_forward.5} parent=0 // loop_pre_header
    _
  $region3: #{encoder_model_forward.5} parent=0 // loop_header
    %s9 = sphi 0, %s13
    %p10 = scmp.ge.s32.totalorder %s9, 4
    %s19 = sphi 0, %s21
    %s22 = sphi 0, %s19
    %s23 = sphi 0, %s22
    %s39 = sphi 0, %s23
    %s43 = sphi 0, %s43
    %s45 = sphi 0, %s43
    %s46 = sphi 0, %s45
    %s60 = sphi 0, %s46
    %s64 = sphi 0, %s64
    %s66 = sphi 0, %s64
    %s67 = sphi 0, %s66
    %s81 = sphi 0, %s67
    %s87 = sphi 0, %s89
    %s90 = sphi 0, %s87
    %s91 = sphi 0, %s90
    %s107 = sphi 0, %s91
  $region4: #{encoder_model_forward.5} parent=0 // loop_header_branch
    %12 = sbr.rel (%p10) target = $region8
  $region5: #{encoder_model_forward.5} parent=0 // loop_body
    %s14 = ssub.s32 %s9, 1
    %s15 = ssub.s32 %s9, 2
    %s16 = sadd.s32 %s9, 1
    %s17 = ssub.s32 %s9, %s16
    %p18 = scmp.eq.s32.totalorder %s17, 0
    %s20 = sadd.s32 %s19, 1
    %s21 = scalar_select %p18, %s19, %s20
    %p24 = pneg %p18
    %p25 = scmp.eq.s32.totalorder %s9, 1
    %p26 = por %p24, %p25
    %p27 = scmp.ne.s32.totalorder %s19, %s22
    %p28 = scmp.eq.s32.totalorder %s9, 0
    %p29 = por %p27, %p28
    %p30 = scmp.ne.s32.totalorder %s19, %s22
    %p31 = scmp.eq.s32.totalorder %s14, 1
    %p32 = por %p30, %p31
    %p33 = scmp.ne.s32.totalorder %s22, %s23
    %p34 = scmp.eq.s32.totalorder %s14, 0
    %p35 = por %p33, %p34
    %p36 = scmp.ne.s32.totalorder %s22, %s23
    %p37 = scmp.eq.s32.totalorder %s15, 1
    %p38 = por %p36, %p37
    %p40 = scmp.ne.s32.totalorder %s23, %s39
    %p41 = scmp.eq.s32.totalorder %s15, 0
    %p42 = por %p40, %p41
    %s44 = sadd.s32 %s43, 1
    %p47 = scmp.eq.s32.totalorder %s9, 1
    %p48 = scmp.ne.s32.totalorder %s43, %s45
    %p49 = scmp.eq.s32.totalorder %s9, 0
    %p50 = por %p48, %p49
    %p51 = scmp.ne.s32.totalorder %s43, %s45
    %p52 = scmp.eq.s32.totalorder %s14, 1
    %p53 = por %p51, %p52
    %p54 = scmp.ne.s32.totalorder %s45, %s46
    %p55 = scmp.eq.s32.totalorder %s14, 0
    %p56 = por %p54, %p55
    %p57 = scmp.ne.s32.totalorder %s45, %s46
    %p58 = scmp.eq.s32.totalorder %s15, 1
    %p59 = por %p57, %p58
    %p61 = scmp.ne.s32.totalorder %s46, %s60
    %p62 = scmp.eq.s32.totalorder %s15, 0
    %p63 = por %p61, %p62
    %s65 = sadd.s32 %s64, 1
    %p68 = scmp.eq.s32.totalorder %s9, 1
    %p69 = scmp.ne.s32.totalorder %s64, %s66
    %p70 = scmp.eq.s32.totalorder %s9, 0
    %p71 = por %p69, %p70
    %p72 = scmp.ne.s32.totalorder %s64, %s66
    %p73 = scmp.eq.s32.totalorder %s14, 1
    %p74 = por %p72, %p73
    %p75 = scmp.ne.s32.totalorder %s66, %s67
    %p76 = scmp.eq.s32.totalorder %s14, 0
    %p77 = por %p75, %p76
    %p78 = scmp.ne.s32.totalorder %s66, %s67
    %p79 = scmp.eq.s32.totalorder %s15, 1
    %p80 = por %p78, %p79
    %p82 = scmp.ne.s32.totalorder %s67, %s81
    %p83 = scmp.eq.s32.totalorder %s15, 0
    %p84 = por %p82, %p83
    %s85 = ssub.s32 %s9, %s16
    %p86 = scmp.eq.s32.totalorder %s85, 0
    %s88 = sadd.s32 %s87, 1
    %s89 = scalar_select %p86, %s87, %s88
    %p92 = pneg %p86
    %p93 = scmp.eq.s32.totalorder %s9, 1
    %p94 = por %p92, %p93
    %p95 = scmp.ne.s32.totalorder %s87, %s90
    %p96 = scmp.eq.s32.totalorder %s9, 0
    %p97 = por %p95, %p96
    %p98 = scmp.ne.s32.totalorder %s87, %s90
    %p99 = scmp.eq.s32.totalorder %s14, 1
    %p100 = por %p98, %p99
    %p101 = scmp.ne.s32.totalorder %s90, %s91
    %p102 = scmp.eq.s32.totalorder %s14, 0
    %p103 = por %p101, %p102
    %p104 = scmp.ne.s32.totalorder %s90, %s91
    %p105 = scmp.eq.s32.totalorder %s15, 1
    %p106 = por %p104, %p105
    %p108 = scmp.ne.s32.totalorder %s91, %s107
    %p109 = scmp.eq.s32.totalorder %s15, 0
    %p110 = por %p108, %p109
    %p111 = scmp.le.s32.totalorder 1, %s9
    %p112 = scmp.lt.s32.totalorder %s9, 3
    %p113 = pnand %p111, %p112
    %p114 = pneg %p113
    // Predicated region
    $region9: #{encoder_model_forward.5} parent=5 // pred_check
      _
    $region10: #{encoder_model_forward.5} parent=5 // pred_check_branch
      %116 = sbr.rel (%p113) target = $region12
    $region11: #{encoder_model_forward.5} parent=5 // pred_region
      %s117 = ssub.s32 %s9, 1
      // Predicated region
      $region13: #{encoder_model_forward.5} parent=11 // pred_check
        %p118 = pneg %p56
      $region14: #{encoder_model_forward.5} parent=11 // pred_check_branch
        %120 = sbr.rel (%p118) target = $region16
      $region15: #{encoder_model_forward.5} parent=11 // pred_region
        _
      $region16: #{encoder_model_forward.5} parent=11 // pred_fallthru
        _
      // Predicated region
      $region17: #{encoder_model_forward.5} parent=11 // pred_check
        %p121 = pneg %p77
      $region18: #{encoder_model_forward.5} parent=11 // pred_check_branch
        %123 = sbr.rel (%p121) target = $region20
      $region19: #{encoder_model_forward.5} parent=11 // pred_region
        _
      $region20: #{encoder_model_forward.5} parent=11 // pred_fallthru
        _
    $region12: #{encoder_model_forward.5} parent=5 // pred_fallthru
      _
    %p124 = scmp.lt.s32.totalorder %s9, 2
    // Predicated region
    $region21: #{encoder_model_forward.5} parent=5 // pred_check
      %p125 = pneg %p124
    $region22: #{encoder_model_forward.5} parent=5 // pred_check_branch
      %127 = sbr.rel (%p125) target = $region24
    $region23: #{encoder_model_forward.5} parent=5 // pred_region
      // Predicated region
      $region25: #{encoder_model_forward.5} parent=23 // pred_check
        %p128 = pneg %p29
      $region26: #{encoder_model_forward.5} parent=23 // pred_check_branch
        %130 = sbr.rel (%p128) target = $region28
      $region27: #{encoder_model_forward.5} parent=23 // pred_region
        %s131 = smul.u32 8, %s9
        %p132 = scmp.lt.s32.totalorder %s131, 15
        %s133 = scalar_select %p132, %s131, 15
        %s134 = smul.addr %s133, 3
        %s135 = smul.addr %s134, 4
        %s136 = scalar_lea.vmem %s0, %s135
        %s137 = smul.u32 8, %s9
      $region28: #{encoder_model_forward.5} parent=23 // pred_fallthru
        _
    $region24: #{encoder_model_forward.5} parent=5 // pred_fallthru
      _
    %p138 = scmp.le.s32.totalorder 1, %s9
    %p139 = scmp.lt.s32.totalorder %s9, 3
    %p140 = pnand %p138, %p139
    %p141 = pneg %p140
    // Predicated region
    $region29: #{encoder_model_forward.5} parent=5 // pred_check
      _
    $region30: #{encoder_model_forward.5} parent=5 // pred_check_branch
      %143 = sbr.rel (%p140) target = $region32
    $region31: #{encoder_model_forward.5} parent=5 // pred_region
      %s144 = ssub.s32 %s9, 1
      %s145 = smul.u32 8, %s14
      %p146 = scmp.lt.s32.totalorder %s145, 15
      %s147 = scalar_select %p146, %s145, 15
      %s148 = smul.addr %s147, 3
      %s149 = smul.addr %s148, 4
      %s150 = scalar_lea.vmem %s0, %s149
      %p151 = pneg %p35
      %p152 = pneg %p32
      %p153 = pneg %p56
      %p154 = pneg %p53
      %p155 = pneg %p77
      %p156 = pneg %p74
      %p157 = pneg %p103
      %p158 = pneg %p100
      %s159 = smul.u32 2, %s14
      %p160 = scmp.lt.s32.totalorder %s159, 3
      %s161 = scalar_select %p160, %s159, 3
      %s162 = smul.addr %s161, 4
      %s163 = scalar_lea.vmem %s3, %s162
      %s164 = smul.u32 8, %s14
      %p165 = scmp.lt.s32.totalorder %s164, 15
      %s166 = scalar_select %p165, %s164, 15
      %s167 = smul.addr %s166, 3
      %s168 = smul.addr %s167, 4
      %s169 = scalar_lea.vmem %s0, %s168
      %s170 = smul.u32 8, %s14
      %s171 = smul.u32 2, %s14
      %p172 = scmp.lt.s32.totalorder %s171, 3
      %s173 = scalar_select %p172, %s171, 3
      %s174 = smul.addr %s173, 4
      %s175 = scalar_lea.vmem %s3, %s174
      %s176 = smul.u32 2, %s14
      %v178 = vld [vmem:[%s169] sm:$0xff]
      %v179 = vld [vmem:[%s169 + $0x8] sm:$0xf]
      %v180 = vld [vmem:[%s169 + $0xc] sm:$0xff]
      %v181 = vld [vmem:[%s169 + $0x14] sm:$0xf]
      %v182 = vld [vmem:[%s169 + $0x18] sm:$0xff]
      %v183 = vld [vmem:[%s169 + $0x20] sm:$0xf]
      %v184 = vld [vmem:[%s169 + $0x24] sm:$0xff]
      %v185 = vld [vmem:[%s169 + $0x2c] sm:$0xf]
      %v186 = vld [vmem:[%s169 + $0x30] sm:$0xff]
      %v187 = vld [vmem:[%s169 + $0x38] sm:$0xf]
      %v188 = vld [vmem:[%s169 + $0x3c] sm:$0xff]
      %v189 = vld [vmem:[%s169 + $0x44] sm:$0xf]
      %v190 = vld [vmem:[%s169 + $0x48] sm:$0xff]
      %v191 = vld [vmem:[%s169 + $0x50] sm:$0xf]
      %v192 = vld [vmem:[%s169 + $0x54] sm:$0xff]
      %v193 = vld [vmem:[%s169 + $0x5c] sm:$0xf]
      %v194 = vld [vmem:[%s1] sm:$0xf]
      %v195 = vld [vmem:[%s1 + $0x4] sm:$0xf]
      %v196 = vld [vmem:[%s1 + $0x8] sm:$0xf]
      %v197 = vld [vmem:[%s1 + $0xc] sm:$0xf]
      %v198 = vld [vmem:[%s1 + $0x10] sm:$0xf]
      %v199 = vld [vmem:[%s1 + $0x14] sm:$0xf]
      %v200 = vld [vmem:[%s1 + $0x18] sm:$0xf]
      %v201 = vld [vmem:[%s1 + $0x1c] sm:$0xf]
      %v202 = vld [vmem:[%s1 + $0x20] sm:$0xf]
      %v203 = vld [vmem:[%s1 + $0x24] sm:$0xf]
      %v204 = vld [vmem:[%s1 + $0x28] sm:$0xf]
      %v205 = vld [vmem:[%s1 + $0x2c] sm:$0xf]
      %v206 = vld [vmem:[%s1 + $0x30] sm:$0xf]
      %v207 = vld [vmem:[%s1 + $0x34] sm:$0xf]
      %v208 = vld [vmem:[%s1 + $0x38] sm:$0xf]
      %v209 = vld [vmem:[%s1 + $0x3c] sm:$0xf]
      %v210 = vld [vmem:[%s1 + $0x40] sm:$0xf]
      %v211 = vld [vmem:[%s1 + $0x44] sm:$0xf]
      %v212 = vld [vmem:[%s1 + $0x48] sm:$0xf]
      %v213 = vld [vmem:[%s1 + $0x4c] sm:$0xf]
      %v214 = vld [vmem:[%s1 + $0x50] sm:$0xf]
      %v215 = vld [vmem:[%s1 + $0x54] sm:$0xf]
      %v216 = vld [vmem:[%s1 + $0x58] sm:$0xf]
      %v217 = vld [vmem:[%s1 + $0x5c] sm:$0xf]
      %v218 = vld [vmem:[%s1 + $0x60] sm:$0xf]
      %v219 = vld [vmem:[%s1 + $0x64] sm:$0xf]
      %v220 = vld [vmem:[%s1 + $0x68] sm:$0xf]
      %v221 = vld [vmem:[%s1 + $0x6c] sm:$0xf]
      %v222 = vld [vmem:[%s1 + $0x70] sm:$0xf]
      %v223 = vld [vmem:[%s1 + $0x74] sm:$0xf]
      %v224 = vld [vmem:[%s1 + $0x78] sm:$0xf]
      %v225 = vld [vmem:[%s1 + $0x7c] sm:$0xf]
      %v226 = vld [vmem:[%s1 + $0x80] sm:$0xf]
      %v227 = vld [vmem:[%s1 + $0x84] sm:$0xf]
      %v228 = vld [vmem:[%s1 + $0x88] sm:$0xf]
      %v229 = vld [vmem:[%s1 + $0x8c] sm:$0xf]
      %v246 = vunpack.c.l.b16 %v178
      %v247 = vunpack.c.h.b16 %v178
      %v248 = vunpack.c.l.b16 %v179
      %v249 = vunpack.c.l.b16 %v180
      %v250 = vunpack.c.h.b16 %v180
      %v251 = vunpack.c.l.b16 %v181
      %v252 = vunpack.c.l.b16 %v182
      %v253 = vunpack.c.h.b16 %v182
      %v254 = vunpack.c.l.b16 %v183
      %v255 = vunpack.c.l.b16 %v184
      %v256 = vunpack.c.h.b16 %v184
      %v257 = vunpack.c.l.b16 %v185
      %v258 = vunpack.c.l.b16 %v186
      %v259 = vunpack.c.h.b16 %v186
      %v260 = vunpack.c.l.b16 %v187
      %v261 = vunpack.c.l.b16 %v188
      %v262 = vunpack.c.h.b16 %v188
      %v263 = vunpack.c.l.b16 %v189
      %v264 = vunpack.c.l.b16 %v190
      %v265 = vunpack.c.h.b16 %v190
      %v266 = vunpack.c.l.b16 %v191
      %v267 = vunpack.c.l.b16 %v192
      %v268 = vunpack.c.h.b16 %v192
      %v269 = vunpack.c.l.b16 %v193
      %v270 = vpack.c.b16 %v249, %v246
      %v271 = vpack.c.b16 %v250, %v247
      %v272 = vpack.c.b16 %v251, %v248
      %v273 = vpack.c.b16 %v255, %v252
      %v274 = vpack.c.b16 %v256, %v253
      %v275 = vpack.c.b16 %v257, %v254
      %v276 = vpack.c.b16 %v261, %v258
      %v277 = vpack.c.b16 %v262, %v259
      %v278 = vpack.c.b16 %v263, %v260
      %v279 = vpack.c.b16 %v267, %v264
      %v280 = vpack.c.b16 %v268, %v265
      %v281 = vpack.c.b16 %v269, %v266
      %v326 = vunpack.c.l.b16 %v194
      %v327 = vunpack.c.l.b16 %v195
      %v328 = vunpack.c.l.b16 %v196
      %v329 = vunpack.c.l.b16 %v197
      %v330 = vunpack.c.l.b16 %v198
      %v331 = vunpack.c.l.b16 %v199
      %v332 = vunpack.c.l.b16 %v200
      %v333 = vunpack.c.l.b16 %v201
      %v334 = vunpack.c.l.b16 %v202
      %v335 = vunpack.c.l.b16 %v203
      %v336 = vunpack.c.l.b16 %v204
      %v337 = vunpack.c.l.b16 %v205
      %v338 = vunpack.c.l.b16 %v206
      %v339 = vunpack.c.l.b16 %v207
      %v340 = vunpack.c.l.b16 %v208
      %v341 = vunpack.c.l.b16 %v209
      %v342 = vunpack.c.l.b16 %v210
      %v343 = vunpack.c.l.b16 %v211
      %v344 = vunpack.c.l.b16 %v212
      %v345 = vunpack.c.l.b16 %v213
      %v346 = vunpack.c.l.b16 %v214
      %v347 = vunpack.c.l.b16 %v215
      %v348 = vunpack.c.l.b16 %v216
      %v349 = vunpack.c.l.b16 %v217
      %v350 = vunpack.c.l.b16 %v218
      %v351 = vunpack.c.l.b16 %v219
      %v352 = vunpack.c.l.b16 %v220
      %v353 = vunpack.c.l.b16 %v221
      %v354 = vunpack.c.l.b16 %v222
      %v355 = vunpack.c.l.b16 %v223
      %v356 = vunpack.c.l.b16 %v224
      %v357 = vunpack.c.l.b16 %v225
      %v358 = vunpack.c.l.b16 %v226
      %v359 = vunpack.c.l.b16 %v227
      %v360 = vunpack.c.l.b16 %v228
      %v361 = vunpack.c.l.b16 %v229
      %v362 = vpack.c.b16 %v327, %v326
      %v363 = vpack.c.b16 %v329, %v328
      %v364 = vpack.c.b16 %v331, %v330
      %v365 = vpack.c.b16 %v333, %v332
      %v366 = vpack.c.b16 %v335, %v334
      %v367 = vpack.c.b16 %v337, %v336
      %v368 = vpack.c.b16 %v339, %v338
      %v369 = vpack.c.b16 %v341, %v340
      %v370 = vpack.c.b16 %v343, %v342
      %v371 = vpack.c.b16 %v345, %v344
      %v372 = vpack.c.b16 %v347, %v346
      %v373 = vpack.c.b16 %v349, %v348
      %v374 = vpack.c.b16 %v351, %v350
      %v375 = vpack.c.b16 %v353, %v352
      %v376 = vpack.c.b16 %v355, %v354
      %v377 = vpack.c.b16 %v357, %v356
      %v378 = vpack.c.b16 %v359, %v358
      %v379 = vpack.c.b16 %v361, %v360
      %vm398 = vcmask 261120
      %v400 = vsel %vm398, %v272, 0
      %v403 = vsel %vm398, %v275, 0
      %v406 = vsel %vm398, %v278, 0
      %v409 = vsel %vm398, %v281, 0
      %411 = vmatprep.subr.bf16.mxu0 0
      %412 = vmatpush1.bf16.msra.mxu0 %v362
      %413 = vmatprep.subr.bf16.mxu0 0
      %414 = vmatpush1.bf16.msra.mxu0 %v363
      %415 = vmatprep.subr.bf16.mxu0 0
      %416 = vmatpush1.bf16.msra.mxu0 %v364
      %417 = vmatprep.subr.bf16.mxu0 0
      %418 = vmatpush1.bf16.msra.mxu0 %v365
      %419 = vmatprep.subr.bf16.mxu0 0
      %420 = vmatpush1.bf16.msra.mxu0 %v366
      %421 = vmatprep.subr.bf16.mxu0 0
      %422 = vmatpush1.bf16.msra.mxu0 %v367
      %423 = vmatprep.subr.bf16.mxu0 0
      %424 = vmatpush1.bf16.msra.mxu0 %v368
      %425 = vmatprep.subr.bf16.mxu0 0
      %426 = vmatpush1.bf16.msra.mxu0 %v369
      %427 = vmatprep.subr.bf16.mxu0 0
      %428 = vmatpush1.bf16.msra.mxu0 %v370
      %429 = vmatprep.subr.bf16.mxu0 0
      %430 = vmatpush1.bf16.msra.mxu0 %v371
      %431 = vmatprep.subr.bf16.mxu0 0
      %432 = vmatpush1.bf16.msra.mxu0 %v372
      %433 = vmatprep.subr.bf16.mxu0 0
      %434 = vmatpush1.bf16.msra.mxu0 %v373
      %435 = vmatprep.subr.bf16.mxu0 0
      %436 = vmatpush1.bf16.msra.mxu0 %v374
      %437 = vmatprep.subr.bf16.mxu0 0
      %438 = vmatpush1.bf16.msra.mxu0 %v375
      %439 = vmatprep.subr.bf16.mxu0 0
      %440 = vmatpush1.bf16.msra.mxu0 %v376
      %441 = vmatprep.subr.bf16.mxu0 0
      %442 = vmatpush1.bf16.msra.mxu0 %v377
      %443 = vmatprep.mubr.bf16.mxu0 %v271
      %444 = vmatmul.mubr.bf16.gmra.mrb[0].mxu0 %v270
      %v445 = vpop.f32.mrb[0].mxu0
      %v446 = vadd.f32 0.0, %v445
      %v447 = vpop.f32.mrb[0].mxu0
      %v448 = vpop.f32.mrb[0].mxu0
      %v449 = vadd.f32 0.0, %v448
      %v450 = vpop.f32.mrb[0].mxu0
      %451 = vmatprep.mubr.bf16.mxu0 %v274
      %452 = vmatmul.mubr.bf16.gmra.mrb[0].mxu0 %v273
      %v453 = vpop.f32.mrb[0].mxu0
      %v454 = vadd.f32 0.0, %v453
      %v455 = vpop.f32.mrb[0].mxu0
      %v456 = vpop.f32.mrb[0].mxu0
      %v457 = vadd.f32 0.0, %v456
      %v458 = vpop.f32.mrb[0].mxu0
      %459 = vmatprep.mubr.bf16.mxu0 %v277
      %460 = vmatmul.mubr.bf16.gmra.mrb[0].mxu0 %v276
      %v461 = vpop.f32.mrb[0].mxu0
      %v462 = vadd.f32 0.0, %v461
      %v463 = vpop.f32.mrb[0].mxu0
      %v464 = vpop.f32.mrb[0].mxu0
      %v465 = vadd.f32 0.0, %v464
      %v466 = vpop.f32.mrb[0].mxu0
      %467 = vmatprep.mubr.bf16.mxu0 %v280
      %468 = vmatmul.mubr.bf16.gmra.mrb[0].mxu0 %v279
      %v469 = vpop.f32.mrb[0].mxu0
      %v470 = vadd.f32 0.0, %v469
      %v471 = vpop.f32.mrb[0].mxu0
      %v472 = vpop.f32.mrb[0].mxu0
      %v473 = vadd.f32 0.0, %v472
      %v474 = vpop.f32.mrb[0].mxu0
      %475 = vdwg.mxu0
      %476 = vmatprep.subr.bf16.mxu0 0
      %477 = vmatpush1.bf16.msra.mxu0 %v378
      %478 = vmatprep.subr.bf16.mxu0 0
      %479 = vmatpush1.bf16.msra.mxu0 %v379
      %480 = vmatprep.subr.bf16.mxu0 0
      %481 = vmatpush1.bf16.msra.mxu0 0
      %482 = vmatprep.subr.bf16.mxu0 0
      %483 = vmatpush1.bf16.msra.mxu0 0
      %484 = vmatprep.subr.bf16.mxu0 0
      %485 = vmatpush1.bf16.msra.mxu0 0
      %486 = vmatprep.subr.bf16.mxu0 0
      %487 = vmatpush1.bf16.msra.mxu0 0
      %488 = vmatprep.subr.bf16.mxu0 0
      %489 = vmatpush1.bf16.msra.mxu0 0
      %490 = vmatprep.subr.bf16.mxu0 0
      %491 = vmatpush1.bf16.msra.mxu0 0
      %492 = vmatprep.subr.bf16.mxu0 0
      %493 = vmatpush1.bf16.msra.mxu0 0
      %494 = vmatprep.subr.bf16.mxu0 0
      %495 = vmatpush1.bf16.msra.mxu0 0
      %496 = vmatprep.subr.bf16.mxu0 0
      %497 = vmatpush1.bf16.msra.mxu0 0
      %498 = vmatprep.subr.bf16.mxu0 0
      %499 = vmatpush1.bf16.msra.mxu0 0
      %500 = vmatprep.subr.bf16.mxu0 0
      %501 = vmatpush1.bf16.msra.mxu0 0
      %502 = vmatprep.subr.bf16.mxu0 0
      %503 = vmatpush1.bf16.msra.mxu0 0
      %504 = vmatprep.subr.bf16.mxu0 0
      %505 = vmatpush1.bf16.msra.mxu0 0
      %506 = vmatprep.subr.bf16.mxu0 0
      %507 = vmatpush1.bf16.msra.mxu0 0
      %508 = vmatprep.mubr.bf16.mxu0 0
      %509 = vmatmul.mubr.bf16.gmra.mrb[0].mxu0 %v400
      %v510 = vpop.f32.mrb[0].mxu0
      %v511 = vadd.f32 %v446, %v510
      %v512 = vpop.f32.mrb[0].mxu0
      %v513 = vpop.f32.mrb[0].mxu0
      %v514 = vadd.f32 %v449, %v513
      %v515 = vpop.f32.mrb[0].mxu0
      %516 = vmatprep.mubr.bf16.mxu0 0
      %517 = vmatmul.mubr.bf16.gmra.mrb[0].mxu0 %v403
      %v518 = vpop.f32.mrb[0].mxu0
      %v519 = vadd.f32 %v454, %v518
      %v520 = vpop.f32.mrb[0].mxu0
      %v521 = vpop.f32.mrb[0].mxu0
      %v522 = vadd.f32 %v457, %v521
      %v523 = vpop.f32.mrb[0].mxu0
      %524 = vmatprep.mubr.bf16.mxu0 0
      %525 = vmatmul.mubr.bf16.gmra.mrb[0].mxu0 %v406
      %v526 = vpop.f32.mrb[0].mxu0
      %v527 = vadd.f32 %v462, %v526
      %v528 = vpop.f32.mrb[0].mxu0
      %v529 = vpop.f32.mrb[0].mxu0
      %v530 = vadd.f32 %v465, %v529
      %v531 = vpop.f32.mrb[0].mxu0
      %532 = vmatprep.mubr.bf16.mxu0 0
      %533 = vmatmul.mubr.bf16.gmra.mrb[0].mxu0 %v409
      %v534 = vpop.f32.mrb[0].mxu0
      %v535 = vadd.f32 %v470, %v534
      %v536 = vpop.f32.mrb[0].mxu0
      %v537 = vpop.f32.mrb[0].mxu0
      %v538 = vadd.f32 %v473, %v537
      %v539 = vpop.f32.mrb[0].mxu0
      %540 = vdwg.mxu0
      %v541 = vmax.f32 %v511, %v519
      %v542 = vmax.f32 %v514, %v522
      %v543 = vmax.f32 %v527, %v535
      %v544 = vmax.f32 %v530, %v538
      %v545 = vmax.f32 %v541, %v543
      %v546 = vmax.f32 %v542, %v544
      %v547 = vld [vmem:[%s2] sm:$0x1]
      %v549 = vlaneseq
      %v550 = vshrl.u32 %v549, 7
      %v551 = vsub.s32 0, %v550
      %v552 = vrot.slane %v547, %v551
      %v554 = vadd.f32 %v545, %v552
      %v555 = vadd.f32 %v546, %v552
      %v556 = vmax.f32 %v554, 0.0
      %v557 = vmax.f32 %v555, 0.0
      %v558 = vpack.c.bf16 %v557, %v556
      %v560 = vunpack.c.l.b16 %v558
      %v561 = vunpack.c.h.b16 %v558
      %v562 = vpack.c.b16 %v560, %v560
      %v563 = vpack.c.b16 %v561, %v561
      %vm566 = vcmask 519168
      %567 = vst.msk [vmem:[%s175] sm:$0xf] %vm566, %v562
      %568 = vst.msk [vmem:[%s175 + $0x4] sm:$0xf] %vm566, %v563
      %s569 = smul.u32 2, %s14
      %p570 = scmp.lt.s32.totalorder %s569, 3
      %s571 = scalar_select %p570, %s569, 3
      %s572 = smul.addr %s571, 4
      %s573 = scalar_lea.vmem %s3, %s572
      // Predicated region
      $region33: #{encoder_model_forward.5} parent=31 // pred_check
        %p574 = pneg %p100
      $region34: #{encoder_model_forward.5} parent=31 // pred_check_branch
        %576 = sbr.rel (%p574) target = $region36
      $region35: #{encoder_model_forward.5} parent=31 // pred_region
        %s577 = smul.u32 2, %s14
      $region36: #{encoder_model_forward.5} parent=31 // pred_fallthru
        _
    $region32: #{encoder_model_forward.5} parent=5 // pred_fallthru
      _
    %p578 = scmp.le.s32.totalorder 2, %s9
    // Predicated region
    $region37: #{encoder_model_forward.5} parent=5 // pred_check
      %p579 = pneg %p578
    $region38: #{encoder_model_forward.5} parent=5 // pred_check_branch
      %581 = sbr.rel (%p579) target = $region40
    $region39: #{encoder_model_forward.5} parent=5 // pred_region
      %s582 = ssub.s32 %s9, 2
      // Predicated region
      $region41: #{encoder_model_forward.5} parent=39 // pred_check
        %p583 = pneg %p106
      $region42: #{encoder_model_forward.5} parent=39 // pred_check_branch
        %585 = sbr.rel (%p583) target = $region44
      $region43: #{encoder_model_forward.5} parent=39 // pred_region
        %s586 = smul.u32 2, %s15
        %p587 = scmp.lt.s32.totalorder %s586, 3
        %s588 = scalar_select %p587, %s586, 3
        %s589 = smul.addr %s588, 4
        %s590 = scalar_lea.vmem %s3, %s589
      $region44: #{encoder_model_forward.5} parent=39 // pred_fallthru
        _
    $region40: #{encoder_model_forward.5} parent=5 // pred_fallthru
      _
  $region6: #{encoder_model_forward.5} parent=0 // loop_footer
    %s13 = sadd.s32 1, %s9
  $region7: #{encoder_model_forward.5} parent=0 // loop_footer_branch
    %8 = sbr.rel target = $region3
  $region8: #{encoder_model_forward.5} parent=0 // loop_exit
    _

// kernel: encoder_model_forward.6
$region0: #{encoder_model_forward.6}
  #allocation0 [shape = 'u32[]', space=smem, size = 0x4, offset = 0x4, fixed_abs, tag = 'smem constant byte address 0x4 - core index']
  #allocation1 [shape = 'u32[144,128]{1,0:T(1,128)}', space=vmem, size = 0x12000, scoped, tag = 'internal scratch']
  %s0 = inlined_call_operand.vmem [shape: bf16[32,576], index: 0, kind: input, shape index: {}]
  %s1 = inlined_call_operand.vmem [shape: bf16[576,128], index: 1, kind: input, shape index: {}]
  %s2 = inlined_call_operand.vmem [shape: f32[1,128], index: 2, kind: input, shape index: {}]
  %s3 = inlined_call_operand.vmem [shape: bf16[8,128], index: 3, kind: output, shape index: {}]
  %s4 = sld [smem:[#allocation0]]
  $region22: #{encoder_model_forward.6} parent=0
    _
  %s6 = ssub.s32 1, %s4
  %s7 = scalar_select 0, %s6, %s4
  // Predicated region
  $region2: #{encoder_model_forward.6} parent=0 // pred_check
    _
  $region3: #{encoder_model_forward.6} parent=0 // pred_check_branch
    %9 = sbr.rel (0) target = $region5
  $region4: #{encoder_model_forward.6} parent=0 // pred_region
    _
  $region5: #{encoder_model_forward.6} parent=0 // pred_fallthru
    _
  // Predicated region
  $region6: #{encoder_model_forward.6} parent=0 // pred_check
    _
  $region7: #{encoder_model_forward.6} parent=0 // pred_check_branch
    %11 = sbr.rel (0) target = $region9
  $region8: #{encoder_model_forward.6} parent=0 // pred_region
    _
  $region9: #{encoder_model_forward.6} parent=0 // pred_fallthru
    _
  // Predicated region
  $region10: #{encoder_model_forward.6} parent=0 // pred_check
    _
  $region11: #{encoder_model_forward.6} parent=0 // pred_check_branch
    %13 = sbr.rel (0) target = $region13
  $region12: #{encoder_model_forward.6} parent=0 // pred_region
    _
  $region13: #{encoder_model_forward.6} parent=0 // pred_fallthru
    _
  %v15 = vld [vmem:[%s0] sm:$0xff]
  %v16 = vld [vmem:[%s0 + $0x8] sm:$0xff]
  %v17 = vld [vmem:[%s0 + $0x10] sm:$0xf]
  %v18 = vld [vmem:[%s0 + $0x14] sm:$0xff]
  %v19 = vld [vmem:[%s0 + $0x1c] sm:$0xff]
  %v20 = vld [vmem:[%s0 + $0x24] sm:$0xf]
  %v21 = vld [vmem:[%s0 + $0x28] sm:$0xff]
  %v22 = vld [vmem:[%s0 + $0x30] sm:$0xff]
  %v23 = vld [vmem:[%s0 + $0x38] sm:$0xf]
  %v24 = vld [vmem:[%s0 + $0x3c] sm:$0xff]
  %v25 = vld [vmem:[%s0 + $0x44] sm:$0xff]
  %v26 = vld [vmem:[%s0 + $0x4c] sm:$0xf]
  %v27 = vld [vmem:[%s1] sm:$0xf]
  %v28 = vld [vmem:[%s1 + $0x4] sm:$0xf]
  %v29 = vld [vmem:[%s1 + $0x8] sm:$0xf]
  %v30 = vld [vmem:[%s1 + $0xc] sm:$0xf]
  %v31 = vld [vmem:[%s1 + $0x10] sm:$0xf]
  %v32 = vld [vmem:[%s1 + $0x14] sm:$0xf]
  %v33 = vld [vmem:[%s1 + $0x18] sm:$0xf]
  %v34 = vld [vmem:[%s1 + $0x1c] sm:$0xf]
  %v35 = vld [vmem:[%s1 + $0x20] sm:$0xf]
  %v36 = vld [vmem:[%s1 + $0x24] sm:$0xf]
  %v37 = vld [vmem:[%s1 + $0x28] sm:$0xf]
  %v38 = vld [vmem:[%s1 + $0x2c] sm:$0xf]
  %v39 = vld [vmem:[%s1 + $0x30] sm:$0xf]
  %v40 = vld [vmem:[%s1 + $0x34] sm:$0xf]
  %v41 = vld [vmem:[%s1 + $0x38] sm:$0xf]
  %v42 = vld [vmem:[%s1 + $0x3c] sm:$0xf]
  %v43 = vld [vmem:[%s1 + $0x40] sm:$0xf]
  %v44 = vld [vmem:[%s1 + $0x44] sm:$0xf]
  %v45 = vld [vmem:[%s1 + $0x48] sm:$0xf]
  %v46 = vld [vmem:[%s1 + $0x4c] sm:$0xf]
  %v47 = vld [vmem:[%s1 + $0x50] sm:$0xf]
  %v48 = vld [vmem:[%s1 + $0x54] sm:$0xf]
  %v49 = vld [vmem:[%s1 + $0x58] sm:$0xf]
  %v50 = vld [vmem:[%s1 + $0x5c] sm:$0xf]
  %v51 = vld [vmem:[%s1 + $0x60] sm:$0xf]
  %v52 = vld [vmem:[%s1 + $0x64] sm:$0xf]
  %v53 = vld [vmem:[%s1 + $0x68] sm:$0xf]
  %v54 = vld [vmem:[%s1 + $0x6c] sm:$0xf]
  %v55 = vld [vmem:[%s1 + $0x70] sm:$0xf]
  %v56 = vld [vmem:[%s1 + $0x74] sm:$0xf]
  %v57 = vld [vmem:[%s1 + $0x78] sm:$0xf]
  %v58 = vld [vmem:[%s1 + $0x7c] sm:$0xf]
  %v59 = vld [vmem:[%s1 + $0x80] sm:$0xf]
  %v60 = vld [vmem:[%s1 + $0x84] sm:$0xf]
  %v61 = vld [vmem:[%s1 + $0x88] sm:$0xf]
  %v62 = vld [vmem:[%s1 + $0x8c] sm:$0xf]
  %v63 = vld [vmem:[%s1 + $0x90] sm:$0xf]
  %v64 = vld [vmem:[%s1 + $0x94] sm:$0xf]
  %v65 = vld [vmem:[%s1 + $0x98] sm:$0xf]
  %v66 = vld [vmem:[%s1 + $0x9c] sm:$0xf]
  %v67 = vld [vmem:[%s1 + $0xa0] sm:$0xf]
  %v68 = vld [vmem:[%s1 + $0xa4] sm:$0xf]
  %v69 = vld [vmem:[%s1 + $0xa8] sm:$0xf]
  %v70 = vld [vmem:[%s1 + $0xac] sm:$0xf]
  %v71 = vld [vmem:[%s1 + $0xb0] sm:$0xf]
  %v72 = vld [vmem:[%s1 + $0xb4] sm:$0xf]
  %v73 = vld [vmem:[%s1 + $0xb8] sm:$0xf]
  %v74 = vld [vmem:[%s1 + $0xbc] sm:$0xf]
  %v75 = vld [vmem:[%s1 + $0xc0] sm:$0xf]
  %v76 = vld [vmem:[%s1 + $0xc4] sm:$0xf]
  %v77 = vld [vmem:[%s1 + $0xc8] sm:$0xf]
  %v78 = vld [vmem:[%s1 + $0xcc] sm:$0xf]
  %v79 = vld [vmem:[%s1 + $0xd0] sm:$0xf]
  %v80 = vld [vmem:[%s1 + $0xd4] sm:$0xf]
  %v81 = vld [vmem:[%s1 + $0xd8] sm:$0xf]
  %v82 = vld [vmem:[%s1 + $0xdc] sm:$0xf]
  %v83 = vld [vmem:[%s1 + $0xe0] sm:$0xf]
  %v84 = vld [vmem:[%s1 + $0xe4] sm:$0xf]
  %v85 = vld [vmem:[%s1 + $0xe8] sm:$0xf]
  %v86 = vld [vmem:[%s1 + $0xec] sm:$0xf]
  %v87 = vld [vmem:[%s1 + $0xf0] sm:$0xf]
  %v88 = vld [vmem:[%s1 + $0xf4] sm:$0xf]
  %v89 = vld [vmem:[%s1 + $0xf8] sm:$0xf]
  %v90 = vld [vmem:[%s1 + $0xfc] sm:$0xf]
  %v91 = vld [vmem:[%s1 + $0x100] sm:$0xf]
  %v92 = vld [vmem:[%s1 + $0x104] sm:$0xf]
  %v93 = vld [vmem:[%s1 + $0x108] sm:$0xf]
  %v94 = vld [vmem:[%s1 + $0x10c] sm:$0xf]
  %v95 = vld [vmem:[%s1 + $0x110] sm:$0xf]
  %v96 = vld [vmem:[%s1 + $0x114] sm:$0xf]
  %v97 = vld [vmem:[%s1 + $0x118] sm:$0xf]
  %v98 = vld [vmem:[%s1 + $0x11c] sm:$0xf]
  %v111 = vunpack.c.l.b16 %v15
  %v112 = vunpack.c.h.b16 %v15
  %v113 = vunpack.c.l.b16 %v16
  %v114 = vunpack.c.h.b16 %v16
  %v115 = vunpack.c.l.b16 %v17
  %v116 = vunpack.c.l.b16 %v18
  %v117 = vunpack.c.h.b16 %v18
  %v118 = vunpack.c.l.b16 %v19
  %v119 = vunpack.c.h.b16 %v19
  %v120 = vunpack.c.l.b16 %v20
  %v121 = vunpack.c.l.b16 %v21
  %v122 = vunpack.c.h.b16 %v21
  %v123 = vunpack.c.l.b16 %v22
  %v124 = vunpack.c.h.b16 %v22
  %v125 = vunpack.c.l.b16 %v23
  %v126 = vunpack.c.l.b16 %v24
  %v127 = vunpack.c.h.b16 %v24
  %v128 = vunpack.c.l.b16 %v25
  %v129 = vunpack.c.h.b16 %v25
  %v130 = vunpack.c.l.b16 %v26
  %v131 = vpack.c.b16 %v116, %v111
  %v132 = vpack.c.b16 %v117, %v112
  %v133 = vpack.c.b16 %v118, %v113
  %v134 = vpack.c.b16 %v119, %v114
  %v135 = vpack.c.b16 %v120, %v115
  %v136 = vpack.c.b16 %v126, %v121
  %v137 = vpack.c.b16 %v127, %v122
  %v138 = vpack.c.b16 %v128, %v123
  %v139 = vpack.c.b16 %v129, %v124
  %v140 = vpack.c.b16 %v130, %v125
  %v221 = vunpack.c.l.b16 %v27
  %v222 = vunpack.c.l.b16 %v28
  %v223 = vunpack.c.l.b16 %v29
  %v224 = vunpack.c.l.b16 %v30
  %v225 = vunpack.c.l.b16 %v31
  %v226 = vunpack.c.l.b16 %v32
  %v227 = vunpack.c.l.b16 %v33
  %v228 = vunpack.c.l.b16 %v34
  %v229 = vunpack.c.l.b16 %v35
  %v230 = vunpack.c.l.b16 %v36
  %v231 = vunpack.c.l.b16 %v37
  %v232 = vunpack.c.l.b16 %v38
  %v233 = vunpack.c.l.b16 %v39
  %v234 = vunpack.c.l.b16 %v40
  %v235 = vunpack.c.l.b16 %v41
  %v236 = vunpack.c.l.b16 %v42
  %v237 = vunpack.c.l.b16 %v43
  %v238 = vunpack.c.l.b16 %v44
  %v239 = vunpack.c.l.b16 %v45
  %v240 = vunpack.c.l.b16 %v46
  %v241 = vunpack.c.l.b16 %v47
  %v242 = vunpack.c.l.b16 %v48
  %v243 = vunpack.c.l.b16 %v49
  %v244 = vunpack.c.l.b16 %v50
  %v245 = vunpack.c.l.b16 %v51
  %v246 = vunpack.c.l.b16 %v52
  %v247 = vunpack.c.l.b16 %v53
  %v248 = vunpack.c.l.b16 %v54
  %v249 = vunpack.c.l.b16 %v55
  %v250 = vunpack.c.l.b16 %v56
  %v251 = vunpack.c.l.b16 %v57
  %v252 = vunpack.c.l.b16 %v58
  %v253 = vunpack.c.l.b16 %v59
  %v254 = vunpack.c.l.b16 %v60
  %v255 = vunpack.c.l.b16 %v61
  %v256 = vunpack.c.l.b16 %v62
  %v257 = vunpack.c.l.b16 %v63
  %v258 = vunpack.c.l.b16 %v64
  %v259 = vunpack.c.l.b16 %v65
  %v260 = vunpack.c.l.b16 %v66
  %v261 = vunpack.c.l.b16 %v67
  %v262 = vunpack.c.l.b16 %v68
  %v263 = vunpack.c.l.b16 %v69
  %v264 = vunpack.c.l.b16 %v70
  %v265 = vunpack.c.l.b16 %v71
  %v266 = vunpack.c.l.b16 %v72
  %v267 = vunpack.c.l.b16 %v73
  %v268 = vunpack.c.l.b16 %v74
  %v269 = vunpack.c.l.b16 %v75
  %v270 = vunpack.c.l.b16 %v76
  %v271 = vunpack.c.l.b16 %v77
  %v272 = vunpack.c.l.b16 %v78
  %v273 = vunpack.c.l.b16 %v79
  %v274 = vunpack.c.l.b16 %v80
  %v275 = vunpack.c.l.b16 %v81
  %v276 = vunpack.c.l.b16 %v82
  %v277 = vunpack.c.l.b16 %v83
  %v278 = vunpack.c.l.b16 %v84
  %v279 = vunpack.c.l.b16 %v85
  %v280 = vunpack.c.l.b16 %v86
  %v281 = vunpack.c.l.b16 %v87
  %v282 = vunpack.c.l.b16 %v88
  %v283 = vunpack.c.l.b16 %v89
  %v284 = vunpack.c.l.b16 %v90
  %v285 = vunpack.c.l.b16 %v91
  %v286 = vunpack.c.l.b16 %v92
  %v287 = vunpack.c.l.b16 %v93
  %v288 = vunpack.c.l.b16 %v94
  %v289 = vunpack.c.l.b16 %v95
  %v290 = vunpack.c.l.b16 %v96
  %v291 = vunpack.c.l.b16 %v97
  %v292 = vunpack.c.l.b16 %v98
  %v293 = vpack.c.b16 %v222, %v221
  %v294 = vpack.c.b16 %v224, %v223
  %v295 = vpack.c.b16 %v226, %v225
  %v296 = vpack.c.b16 %v228, %v227
  %v297 = vpack.c.b16 %v230, %v229
  %v298 = vpack.c.b16 %v232, %v231
  %v299 = vpack.c.b16 %v234, %v233
  %v300 = vpack.c.b16 %v236, %v235
  %v301 = vpack.c.b16 %v238, %v237
  %v302 = vpack.c.b16 %v240, %v239
  %v303 = vpack.c.b16 %v242, %v241
  %v304 = vpack.c.b16 %v244, %v243
  %v305 = vpack.c.b16 %v246, %v245
  %v306 = vpack.c.b16 %v248, %v247
  %v307 = vpack.c.b16 %v250, %v249
  %v308 = vpack.c.b16 %v252, %v251
  %v309 = vpack.c.b16 %v254, %v253
  %v310 = vpack.c.b16 %v256, %v255
  %v311 = vpack.c.b16 %v258, %v257
  %v312 = vpack.c.b16 %v260, %v259
  %v313 = vpack.c.b16 %v262, %v261
  %v314 = vpack.c.b16 %v264, %v263
  %v315 = vpack.c.b16 %v266, %v265
  %v316 = vpack.c.b16 %v268, %v267
  %v317 = vpack.c.b16 %v270, %v269
  %v318 = vpack.c.b16 %v272, %v271
  %v319 = vpack.c.b16 %v274, %v273
  %v320 = vpack.c.b16 %v276, %v275
  %v321 = vpack.c.b16 %v278, %v277
  %v322 = vpack.c.b16 %v280, %v279
  %v323 = vpack.c.b16 %v282, %v281
  %v324 = vpack.c.b16 %v284, %v283
  %v325 = vpack.c.b16 %v286, %v285
  %v326 = vpack.c.b16 %v288, %v287
  %v327 = vpack.c.b16 %v290, %v289
  %v328 = vpack.c.b16 %v292, %v291
  %vm365 = vcmask 523264
  %v367 = vsel %vm365, %v135, 0
  %v370 = vsel %vm365, %v140, 0
  %372 = vmatprep.subr.bf16.mxu0 0
  %373 = vmatpush1.bf16.msra.mxu0 %v293
  %374 = vmatprep.subr.bf16.mxu0 0
  %375 = vmatpush1.bf16.msra.mxu0 %v294
  %376 = vmatprep.subr.bf16.mxu0 0
  %377 = vmatpush1.bf16.msra.mxu0 %v295
  %378 = vmatprep.subr.bf16.mxu0 0
  %379 = vmatpush1.bf16.msra.mxu0 %v296
  %380 = vmatprep.subr.bf16.mxu0 0
  %381 = vmatpush1.bf16.msra.mxu0 %v297
  %382 = vmatprep.subr.bf16.mxu0 0
  %383 = vmatpush1.bf16.msra.mxu0 %v298
  %384 = vmatprep.subr.bf16.mxu0 0
  %385 = vmatpush1.bf16.msra.mxu0 %v299
  %386 = vmatprep.subr.bf16.mxu0 0
  %387 = vmatpush1.bf16.msra.mxu0 %v300
  %388 = vmatprep.subr.bf16.mxu0 0
  %389 = vmatpush1.bf16.msra.mxu0 %v301
  %390 = vmatprep.subr.bf16.mxu0 0
  %391 = vmatpush1.bf16.msra.mxu0 %v302
  %392 = vmatprep.subr.bf16.mxu0 0
  %393 = vmatpush1.bf16.msra.mxu0 %v303
  %394 = vmatprep.subr.bf16.mxu0 0
  %395 = vmatpush1.bf16.msra.mxu0 %v304
  %396 = vmatprep.subr.bf16.mxu0 0
  %397 = vmatpush1.bf16.msra.mxu0 %v305
  %398 = vmatprep.subr.bf16.mxu0 0
  %399 = vmatpush1.bf16.msra.mxu0 %v306
  %400 = vmatprep.subr.bf16.mxu0 0
  %401 = vmatpush1.bf16.msra.mxu0 %v307
  %402 = vmatprep.subr.bf16.mxu0 0
  %403 = vmatpush1.bf16.msra.mxu0 %v308
  %404 = vmatprep.mubr.bf16.mxu0 %v132
  %405 = vmatmul.mubr.bf16.gmra.mrb[0].mxu0 %v131
  %v406 = vpop.f32.mrb[0].mxu0
  %v407 = vadd.f32 0.0, %v406
  %v408 = vpop.f32.mrb[0].mxu0
  %v409 = vpop.f32.mrb[0].mxu0
  %v410 = vadd.f32 0.0, %v409
  %v411 = vpop.f32.mrb[0].mxu0
  %412 = vmatprep.mubr.bf16.mxu0 %v137
  %413 = vmatmul.mubr.bf16.gmra.mrb[0].mxu0 %v136
  %v414 = vpop.f32.mrb[0].mxu0
  %v415 = vadd.f32 0.0, %v414
  %v416 = vpop.f32.mrb[0].mxu0
  %v417 = vpop.f32.mrb[0].mxu0
  %v418 = vadd.f32 0.0, %v417
  %v419 = vpop.f32.mrb[0].mxu0
  %420 = vdwg.mxu0
  %421 = vmatprep.subr.bf16.mxu0 0
  %422 = vmatpush1.bf16.msra.mxu0 %v309
  %423 = vmatprep.subr.bf16.mxu0 0
  %424 = vmatpush1.bf16.msra.mxu0 %v310
  %425 = vmatprep.subr.bf16.mxu0 0
  %426 = vmatpush1.bf16.msra.mxu0 %v311
  %427 = vmatprep.subr.bf16.mxu0 0
  %428 = vmatpush1.bf16.msra.mxu0 %v312
  %429 = vmatprep.subr.bf16.mxu0 0
  %430 = vmatpush1.bf16.msra.mxu0 %v313
  %431 = vmatprep.subr.bf16.mxu0 0
  %432 = vmatpush1.bf16.msra.mxu0 %v314
  %433 = vmatprep.subr.bf16.mxu0 0
  %434 = vmatpush1.bf16.msra.mxu0 %v315
  %435 = vmatprep.subr.bf16.mxu0 0
  %436 = vmatpush1.bf16.msra.mxu0 %v316
  %437 = vmatprep.subr.bf16.mxu0 0
  %438 = vmatpush1.bf16.msra.mxu0 %v317
  %439 = vmatprep.subr.bf16.mxu0 0
  %440 = vmatpush1.bf16.msra.mxu0 %v318
  %441 = vmatprep.subr.bf16.mxu0 0
  %442 = vmatpush1.bf16.msra.mxu0 %v319
  %443 = vmatprep.subr.bf16.mxu0 0
  %444 = vmatpush1.bf16.msra.mxu0 %v320
  %445 = vmatprep.subr.bf16.mxu0 0
  %446 = vmatpush1.bf16.msra.mxu0 %v321
  %447 = vmatprep.subr.bf16.mxu0 0
  %448 = vmatpush1.bf16.msra.mxu0 %v322
  %449 = vmatprep.subr.bf16.mxu0 0
  %450 = vmatpush1.bf16.msra.mxu0 %v323
  %451 = vmatprep.subr.bf16.mxu0 0
  %452 = vmatpush1.bf16.msra.mxu0 %v324
  %453 = vmatprep.mubr.bf16.mxu0 %v134
  %454 = vmatmul.mubr.bf16.gmra.mrb[0].mxu0 %v133
  %v455 = vpop.f32.mrb[0].mxu0
  %v456 = vadd.f32 %v407, %v455
  %v457 = vpop.f32.mrb[0].mxu0
  %v458 = vpop.f32.mrb[0].mxu0
  %v459 = vadd.f32 %v410, %v458
  %v460 = vpop.f32.mrb[0].mxu0
  %461 = vmatprep.mubr.bf16.mxu0 %v139
  %462 = vmatmul.mubr.bf16.gmra.mrb[0].mxu0 %v138
  %v463 = vpop.f32.mrb[0].mxu0
  %v464 = vadd.f32 %v415, %v463
  %v465 = vpop.f32.mrb[0].mxu0
  %v466 = vpop.f32.mrb[0].mxu0
  %v467 = vadd.f32 %v418, %v466
  %v468 = vpop.f32.mrb[0].mxu0
  %469 = vdwg.mxu0
  %470 = vmatprep.subr.bf16.mxu0 0
  %471 = vmatpush1.bf16.msra.mxu0 %v325
  %472 = vmatprep.subr.bf16.mxu0 0
  %473 = vmatpush1.bf16.msra.mxu0 %v326
  %474 = vmatprep.subr.bf16.mxu0 0
  %475 = vmatpush1.bf16.msra.mxu0 %v327
  %476 = vmatprep.subr.bf16.mxu0 0
  %477 = vmatpush1.bf16.msra.mxu0 %v328
  %478 = vmatprep.subr.bf16.mxu0 0
  %479 = vmatpush1.bf16.msra.mxu0 0
  %480 = vmatprep.subr.bf16.mxu0 0
  %481 = vmatpush1.bf16.msra.mxu0 0
  %482 = vmatprep.subr.bf16.mxu0 0
  %483 = vmatpush1.bf16.msra.mxu0 0
  %484 = vmatprep.subr.bf16.mxu0 0
  %485 = vmatpush1.bf16.msra.mxu0 0
  %486 = vmatprep.subr.bf16.mxu0 0
  %487 = vmatpush1.bf16.msra.mxu0 0
  %488 = vmatprep.subr.bf16.mxu0 0
  %489 = vmatpush1.bf16.msra.mxu0 0
  %490 = vmatprep.subr.bf16.mxu0 0
  %491 = vmatpush1.bf16.msra.mxu0 0
  %492 = vmatprep.subr.bf16.mxu0 0
  %493 = vmatpush1.bf16.msra.mxu0 0
  %494 = vmatprep.subr.bf16.mxu0 0
  %495 = vmatpush1.bf16.msra.mxu0 0
  %496 = vmatprep.subr.bf16.mxu0 0
  %497 = vmatpush1.bf16.msra.mxu0 0
  %498 = vmatprep.subr.bf16.mxu0 0
  %499 = vmatpush1.bf16.msra.mxu0 0
  %500 = vmatprep.subr.bf16.mxu0 0
  %501 = vmatpush1.bf16.msra.mxu0 0
  %502 = vmatprep.mubr.bf16.mxu0 0
  %503 = vmatmul.mubr.bf16.gmra.mrb[0].mxu0 %v367
  %v504 = vpop.f32.mrb[0].mxu0
  %v505 = vadd.f32 %v456, %v504
  %v506 = vpop.f32.mrb[0].mxu0
  %v507 = vpop.f32.mrb[0].mxu0
  %v508 = vadd.f32 %v459, %v507
  %v509 = vpop.f32.mrb[0].mxu0
  %510 = vmatprep.mubr.bf16.mxu0 0
  %511 = vmatmul.mubr.bf16.gmra.mrb[0].mxu0 %v370
  %v512 = vpop.f32.mrb[0].mxu0
  %v513 = vadd.f32 %v464, %v512
  %v514 = vpop.f32.mrb[0].mxu0
  %v515 = vpop.f32.mrb[0].mxu0
  %v516 = vadd.f32 %v467, %v515
  %v517 = vpop.f32.mrb[0].mxu0
  %518 = vdwg.mxu0
  %v519 = vmax.f32 %v505, %v508
  %v520 = vmax.f32 %v513, %v516
  %v521 = vmax.f32 %v519, %v520
  %v522 = vld [vmem:[%s2] sm:$0x1]
  %v524 = vlaneseq
  %v525 = vshrl.u32 %v524, 7
  %v526 = vsub.s32 0, %v525
  %v527 = vrot.slane %v522, %v526
  %v529 = vadd.f32 %v521, %v527
  %v530 = vmax.f32 %v529, 0.0
  %v531 = vpack.c.bf16 %v530, %v530
  %532 = vst [vmem:[%s3] sm:$0xf] %v531
  // Predicated region
  $region14: #{encoder_model_forward.6} parent=0 // pred_check
    _
  $region15: #{encoder_model_forward.6} parent=0 // pred_check_branch
    %534 = sbr.rel (0) target = $region17
  $region16: #{encoder_model_forward.6} parent=0 // pred_region
    _
  $region17: #{encoder_model_forward.6} parent=0 // pred_fallthru
    _
  // Predicated region
  $region18: #{encoder_model_forward.6} parent=0 // pred_check
    _
  $region19: #{encoder_model_forward.6} parent=0 // pred_check_branch
    %536 = sbr.rel (0) target = $region21
  $region20: #{encoder_model_forward.6} parent=0 // pred_region
    _
  $region21: #{encoder_model_forward.6} parent=0 // pred_fallthru
    _

// kernel: encoder_model_forward.7
$region0: #{encoder_model_forward.7}
  #allocation0 [shape = 'u32[]', space=smem, size = 0x4, offset = 0x4, fixed_abs, tag = 'smem constant byte address 0x4 - core index']
  #allocation1 [shape = 'u32[144,128]{1,0:T(1,128)}', space=vmem, size = 0x12000, scoped, tag = 'internal scratch']
  #allocation2 [shape = 'f32[2,128]{1,0:T(2,128)}', space=vmem, size = 0x400, scoped, tag = 'scratch operand']
  %s0 = inlined_call_operand.vmem [shape: bf16[2,512], index: 0, kind: input, shape index: {}]
  %s1 = inlined_call_operand.vmem [shape: bf16[512,128], index: 1, kind: input, shape index: {}]
  %s2 = inlined_call_operand.vmem [shape: f32[1,128], index: 2, kind: input, shape index: {}]
  %s3 = inlined_call_operand.vmem [shape: bf16[128,5], index: 3, kind: input, shape index: {}]
  %s4 = inlined_call_operand.vmem [shape: f32[1,5], index: 4, kind: input, shape index: {}]
  %s5 = inlined_call_operand.hbm [shape: f32[2,5], index: 5, kind: output, shape index: {}]
  %s6 = sld [smem:[#allocation0]]
  $region61: #{encoder_model_forward.7} parent=0
    _
  %s8 = ssub.s32 1, %s6
  %s9 = scalar_select 0, %s8, %s6
  $region1: #{encoder_model_forward.7} parent=0
    #allocation3 [shape = 'u8[1024]{0}', space=vmem, size = 0x400, scoped, tag = 'output window, operand 0, single buffered']
    #allocation4 [shape = 's32[2]{0}', space=sflag, size = 0x8, scoped, tag = 'scoped memory for encoder_model_forward.7']
    %10 = vsyncpa [#allocation4], 0
    loop: start=0, step=1, limit=4
    $region2: #{encoder_model_forward.7} parent=1 // loop_pre_header
      _
    $region3: #{encoder_model_forward.7} parent=1 // loop_header
      %s12 = sphi 0, %s16
      %p13 = scmp.ge.s32.totalorder %s12, 4
      %s22 = sphi 0, %s24
      %s25 = sphi 0, %s22
      %s26 = sphi 0, %s25
      %s42 = sphi 0, %s26
      %s48 = sphi 0, %s50
      %s51 = sphi 0, %s48
      %s52 = sphi 0, %s51
      %s68 = sphi 0, %s52
      %s72 = sphi 0, %s72
      %s74 = sphi 0, %s72
      %s75 = sphi 0, %s74
      %s89 = sphi 0, %s75
      %s93 = sphi 0, %s93
      %s95 = sphi 0, %s93
      %s96 = sphi 0, %s95
      %s110 = sphi 0, %s96
      %s114 = sphi 0, %s114
      %s116 = sphi 0, %s114
      %s117 = sphi 0, %s116
      %s131 = sphi 0, %s117
      %s135 = sphi 0, %s135
      %s137 = sphi 0, %s135
      %s138 = sphi 0, %s137
      %s152 = sphi 0, %s138
    $region4: #{encoder_model_forward.7} parent=1 // loop_header_branch
      %15 = sbr.rel (%p13) target = $region8
    $region5: #{encoder_model_forward.7} parent=1 // loop_body
      %s17 = ssub.s32 %s12, 1
      %s18 = ssub.s32 %s12, 2
      %s19 = sadd.s32 %s12, 1
      %s20 = ssub.s32 %s12, %s19
      %p21 = scmp.eq.s32.totalorder %s20, 0
      %s23 = sadd.s32 %s22, 1
      %s24 = scalar_select %p21, %s22, %s23
      %p27 = pneg %p21
      %p28 = scmp.eq.s32.totalorder %s12, 1
      %p29 = por %p27, %p28
      %p30 = scmp.ne.s32.totalorder %s22, %s25
      %p31 = scmp.eq.s32.totalorder %s12, 0
      %p32 = por %p30, %p31
      %p33 = scmp.ne.s32.totalorder %s22, %s25
      %p34 = scmp.eq.s32.totalorder %s17, 1
      %p35 = por %p33, %p34
      %p36 = scmp.ne.s32.totalorder %s25, %s26
      %p37 = scmp.eq.s32.totalorder %s17, 0
      %p38 = por %p36, %p37
      %p39 = scmp.ne.s32.totalorder %s25, %s26
      %p40 = scmp.eq.s32.totalorder %s18, 1
      %p41 = por %p39, %p40
      %p43 = scmp.ne.s32.totalorder %s26, %s42
      %p44 = scmp.eq.s32.totalorder %s18, 0
      %p45 = por %p43, %p44
      %s46 = ssub.s32 %s12, %s19
      %p47 = scmp.eq.s32.totalorder %s46, 0
      %s49 = sadd.s32 %s48, 1
      %s50 = scalar_select %p47, %s48, %s49
      %p53 = pneg %p47
      %p54 = scmp.eq.s32.totalorder %s12, 1
      %p55 = por %p53, %p54
      %p56 = scmp.ne.s32.totalorder %s48, %s51
      %p57 = scmp.eq.s32.totalorder %s12, 0
      %p58 = por %p56, %p57
      %p59 = scmp.ne.s32.totalorder %s48, %s51
      %p60 = scmp.eq.s32.totalorder %s17, 1
      %p61 = por %p59, %p60
      %p62 = scmp.ne.s32.totalorder %s51, %s52
      %p63 = scmp.eq.s32.totalorder %s17, 0
      %p64 = por %p62, %p63
      %p65 = scmp.ne.s32.totalorder %s51, %s52
      %p66 = scmp.eq.s32.totalorder %s18, 1
      %p67 = por %p65, %p66
      %p69 = scmp.ne.s32.totalorder %s52, %s68
      %p70 = scmp.eq.s32.totalorder %s18, 0
      %p71 = por %p69, %p70
      %s73 = sadd.s32 %s72, 1
      %p76 = scmp.eq.s32.totalorder %s12, 1
      %p77 = scmp.ne.s32.totalorder %s72, %s74
      %p78 = scmp.eq.s32.totalorder %s12, 0
      %p79 = por %p77, %p78
      %p80 = scmp.ne.s32.totalorder %s72, %s74
      %p81 = scmp.eq.s32.totalorder %s17, 1
      %p82 = por %p80, %p81
      %p83 = scmp.ne.s32.totalorder %s74, %s75
      %p84 = scmp.eq.s32.totalorder %s17, 0
      %p85 = por %p83, %p84
      %p86 = scmp.ne.s32.totalorder %s74, %s75
      %p87 = scmp.eq.s32.totalorder %s18, 1
      %p88 = por %p86, %p87
      %p90 = scmp.ne.s32.totalorder %s75, %s89
      %p91 = scmp.eq.s32.totalorder %s18, 0
      %p92 = por %p90, %p91
      %s94 = sadd.s32 %s93, 1
      %p97 = scmp.eq.s32.totalorder %s12, 1
      %p98 = scmp.ne.s32.totalorder %s93, %s95
      %p99 = scmp.eq.s32.totalorder %s12, 0
      %p100 = por %p98, %p99
      %p101 = scmp.ne.s32.totalorder %s93, %s95
      %p102 = scmp.eq.s32.totalorder %s17, 1
      %p103 = por %p101, %p102
      %p104 = scmp.ne.s32.totalorder %s95, %s96
      %p105 = scmp.eq.s32.totalorder %s17, 0
      %p106 = por %p104, %p105
      %p107 = scmp.ne.s32.totalorder %s95, %s96
      %p108 = scmp.eq.s32.totalorder %s18, 1
      %p109 = por %p107, %p108
      %p111 = scmp.ne.s32.totalorder %s96, %s110
      %p112 = scmp.eq.s32.totalorder %s18, 0
      %p113 = por %p111, %p112
      %s115 = sadd.s32 %s114, 1
      %p118 = scmp.eq.s32.totalorder %s12, 1
      %p119 = scmp.ne.s32.totalorder %s114, %s116
      %p120 = scmp.eq.s32.totalorder %s12, 0
      %p121 = por %p119, %p120
      %p122 = scmp.ne.s32.totalorder %s114, %s116
      %p123 = scmp.eq.s32.totalorder %s17, 1
      %p124 = por %p122, %p123
      %p125 = scmp.ne.s32.totalorder %s116, %s117
      %p126 = scmp.eq.s32.totalorder %s17, 0
      %p127 = por %p125, %p126
      %p128 = scmp.ne.s32.totalorder %s116, %s117
      %p129 = scmp.eq.s32.totalorder %s18, 1
      %p130 = por %p128, %p129
      %p132 = scmp.ne.s32.totalorder %s117, %s131
      %p133 = scmp.eq.s32.totalorder %s18, 0
      %p134 = por %p132, %p133
      %s136 = sadd.s32 %s135, 1
      %p139 = scmp.eq.s32.totalorder %s12, 1
      %p140 = scmp.ne.s32.totalorder %s135, %s137
      %p141 = scmp.eq.s32.totalorder %s12, 0
      %p142 = por %p140, %p141
      %p143 = scmp.ne.s32.totalorder %s135, %s137
      %p144 = scmp.eq.s32.totalorder %s17, 1
      %p145 = por %p143, %p144
      %p146 = scmp.ne.s32.totalorder %s137, %s138
      %p147 = scmp.eq.s32.totalorder %s17, 0
      %p148 = por %p146, %p147
      %p149 = scmp.ne.s32.totalorder %s137, %s138
      %p150 = scmp.eq.s32.totalorder %s18, 1
      %p151 = por %p149, %p150
      %p153 = scmp.ne.s32.totalorder %s138, %s152
      %p154 = scmp.eq.s32.totalorder %s18, 0
      %p155 = por %p153, %p154
      %p156 = scmp.le.s32.totalorder 1, %s12
      %p157 = scmp.lt.s32.totalorder %s12, 3
      %p158 = pnand %p156, %p157
      %p159 = pneg %p158
      // Predicated region
      $region9: #{encoder_model_forward.7} parent=5 // pred_check
        _
      $region10: #{encoder_model_forward.7} parent=5 // pred_check_branch
        %161 = sbr.rel (%p158) target = $region12
      $region11: #{encoder_model_forward.7} parent=5 // pred_region
        %s162 = ssub.s32 %s12, 1
        // Predicated region
        $region13: #{encoder_model_forward.7} parent=11 // pred_check
          %p163 = pneg %p85
        $region14: #{encoder_model_forward.7} parent=11 // pred_check_branch
          %165 = sbr.rel (%p163) target = $region16
        $region15: #{encoder_model_forward.7} parent=11 // pred_region
          _
        $region16: #{encoder_model_forward.7} parent=11 // pred_fallthru
          _
        // Predicated region
        $region17: #{encoder_model_forward.7} parent=11 // pred_check
          %p166 = pneg %p106
        $region18: #{encoder_model_forward.7} parent=11 // pred_check_branch
          %168 = sbr.rel (%p166) target = $region20
        $region19: #{encoder_model_forward.7} parent=11 // pred_region
          _
        $region20: #{encoder_model_forward.7} parent=11 // pred_fallthru
          _
        // Predicated region
        $region21: #{encoder_model_forward.7} parent=11 // pred_check
          %p169 = pneg %p127
        $region22: #{encoder_model_forward.7} parent=11 // pred_check_branch
          %171 = sbr.rel (%p169) target = $region24
        $region23: #{encoder_model_forward.7} parent=11 // pred_region
          _
        $region24: #{encoder_model_forward.7} parent=11 // pred_fallthru
          _
      $region12: #{encoder_model_forward.7} parent=5 // pred_fallthru
        _
      %p172 = scmp.lt.s32.totalorder %s12, 2
      // Predicated region
      $region25: #{encoder_model_forward.7} parent=5 // pred_check
        %p173 = pneg %p172
      $region26: #{encoder_model_forward.7} parent=5 // pred_check_branch
        %175 = sbr.rel (%p173) target = $region28
      $region27: #{encoder_model_forward.7} parent=5 // pred_region
        // Predicated region
        $region29: #{encoder_model_forward.7} parent=27 // pred_check
          %p176 = pneg %p32
        $region30: #{encoder_model_forward.7} parent=27 // pred_check_branch
          %178 = sbr.rel (%p176) target = $region32
        $region31: #{encoder_model_forward.7} parent=27 // pred_region
          %s179 = smul.u32 2, %s12
          %p180 = scmp.lt.s32.totalorder %s179, 3
          %s181 = scalar_select %p180, %s179, 3
          %s182 = scalar_lea.vmem %s0, %s181
          %s183 = smul.u32 2, %s12
        $region32: #{encoder_model_forward.7} parent=27 // pred_fallthru
          _
        // Predicated region
        $region33: #{encoder_model_forward.7} parent=27 // pred_check
          %p184 = pneg %p58
        $region34: #{encoder_model_forward.7} parent=27 // pred_check_branch
          %186 = sbr.rel (%p184) target = $region36
        $region35: #{encoder_model_forward.7} parent=27 // pred_region
          %s187 = smul.u32 32, %s12
          %p188 = scmp.lt.s32.totalorder %s187, 63
          %s189 = scalar_select %p188, %s187, 63
          %s190 = smul.addr %s189, 4
          %s191 = scalar_lea.vmem %s1, %s190
          %s192 = smul.u32 32, %s12
        $region36: #{encoder_model_forward.7} parent=27 // pred_fallthru
          _
      $region28: #{encoder_model_forward.7} parent=5 // pred_fallthru
        _
      %p193 = scmp.le.s32.totalorder 1, %s12
      %p194 = scmp.lt.s32.totalorder %s12, 3
      %p195 = pnand %p193, %p194
      %p196 = pneg %p195
      // Predicated region
      $region37: #{encoder_model_forward.7} parent=5 // pred_check
        _
      $region38: #{encoder_model_forward.7} parent=5 // pred_check_branch
        %198 = sbr.rel (%p195) target = $region40
      $region39: #{encoder_model_forward.7} parent=5 // pred_region
        %s199 = ssub.s32 %s12, 1
        %s200 = smul.u32 2, %s17
        %p201 = scmp.lt.s32.totalorder %s200, 3
        %s202 = scalar_select %p201, %s200, 3
        %s203 = scalar_lea.vmem %s0, %s202
        %p204 = pneg %p38
        %p205 = pneg %p35
        %s206 = smul.u32 32, %s17
        %p207 = scmp.lt.s32.totalorder %s206, 63
        %s208 = scalar_select %p207, %s206, 63
        %s209 = smul.addr %s208, 4
        %s210 = scalar_lea.vmem %s1, %s209
        %p211 = pneg %p64
        %p212 = pneg %p61
        %p213 = pneg %p85
        %p214 = pneg %p82
        %p215 = pneg %p106
        %p216 = pneg %p103
        %p217 = pneg %p127
        %p218 = pneg %p124
        %p219 = pneg %p148
        %p220 = pneg %p145
        %s221 = smul.u32 2, %s17
        %p222 = scmp.lt.s32.totalorder %s221, 3
        %s223 = scalar_select %p222, %s221, 3
        %s224 = scalar_lea.vmem %s0, %s223
        %s225 = smul.u32 2, %s17
        %s226 = smul.u32 32, %s17
        %p227 = scmp.lt.s32.totalorder %s226, 63
        %s228 = scalar_select %p227, %s226, 63
        %s229 = smul.addr %s228, 4
        %s230 = scalar_lea.vmem %s1, %s229
        %s231 = smul.u32 32, %s17
        %p233 = scmp.eq.s32.totalorder %s17, 0
        // Predicated region
        $region41: #{encoder_model_forward.7} parent=39 // pred_check
          %p234 = pneg %p233
        $region42: #{encoder_model_forward.7} parent=39 // pred_check_branch
          %236 = sbr.rel (%p234) target = $region44
        $region43: #{encoder_model_forward.7} parent=39 // pred_region
          %237 = vst [vmem:[#allocation2] sm:$0x3] 0.0
        $region44: #{encoder_model_forward.7} parent=39 // pred_fallthru
          _
        %v238 = vld [vmem:[#allocation2] sm:$0x3]
        %v239 = vld [vmem:[%s224] sm:$0x3]
        %v240 = vld [vmem:[%s230] sm:$0xf]
        %v241 = vld [vmem:[%s230 + $0x4] sm:$0xf]
        %v242 = vld [vmem:[%s230 + $0x8] sm:$0xf]
        %v243 = vld [vmem:[%s230 + $0xc] sm:$0xf]
        %v244 = vld [vmem:[%s230 + $0x10] sm:$0xf]
        %v245 = vld [vmem:[%s230 + $0x14] sm:$0xf]
        %v246 = vld [vmem:[%s230 + $0x18] sm:$0xf]
        %v247 = vld [vmem:[%s230 + $0x1c] sm:$0xf]
        %v248 = vld [vmem:[%s230 + $0x20] sm:$0xf]
        %v249 = vld [vmem:[%s230 + $0x24] sm:$0xf]
        %v250 = vld [vmem:[%s230 + $0x28] sm:$0xf]
        %v251 = vld [vmem:[%s230 + $0x2c] sm:$0xf]
        %v252 = vld [vmem:[%s230 + $0x30] sm:$0xf]
        %v253 = vld [vmem:[%s230 + $0x34] sm:$0xf]
        %v254 = vld [vmem:[%s230 + $0x38] sm:$0xf]
        %v255 = vld [vmem:[%s230 + $0x3c] sm:$0xf]
        %v256 = vld [vmem:[%s230 + $0x40] sm:$0xf]
        %v257 = vld [vmem:[%s230 + $0x44] sm:$0xf]
        %v258 = vld [vmem:[%s230 + $0x48] sm:$0xf]
        %v259 = vld [vmem:[%s230 + $0x4c] sm:$0xf]
        %v260 = vld [vmem:[%s230 + $0x50] sm:$0xf]
        %v261 = vld [vmem:[%s230 + $0x54] sm:$0xf]
        %v262 = vld [vmem:[%s230 + $0x58] sm:$0xf]
        %v263 = vld [vmem:[%s230 + $0x5c] sm:$0xf]
        %v264 = vld [vmem:[%s230 + $0x60] sm:$0xf]
        %v265 = vld [vmem:[%s230 + $0x64] sm:$0xf]
        %v266 = vld [vmem:[%s230 + $0x68] sm:$0xf]
        %v267 = vld [vmem:[%s230 + $0x6c] sm:$0xf]
        %v268 = vld [vmem:[%s230 + $0x70] sm:$0xf]
        %v269 = vld [vmem:[%s230 + $0x74] sm:$0xf]
        %v270 = vld [vmem:[%s230 + $0x78] sm:$0xf]
        %v271 = vld [vmem:[%s230 + $0x7c] sm:$0xf]
        %v274 = vunpack.c.l.s4 1966171168
        %v275 = vunpack.c.0.s8 %v274
        %v276 = vlaneseq
        %v277 = vshrl.u32 %v276, 7
        %v278 = vsub.s32 %v275, %v277
        %v279 = vrot.slane %v239, %v278
        %v280 = vcombine.high %v279, %v279
        %v282 = vunpack.c.l.s4 1966171168
        %v283 = vunpack.c.0.s8 %v282
        %v284 = vlaneseq
        %v285 = vshrl.u32 %v284, 7
        %v286 = vsub.s32 %v283, %v285
        %v287 = vrot.slane %v279, %v286
        %v289 = vunpack.c.l.s4 1966171168
        %v290 = vunpack.c.0.s8 %v289
        %v291 = vlaneseq
        %v292 = vshrl.u32 %v291, 7
        %v293 = vsub.s32 %v290, %v292
        %v294 = vrot.slane %v280, %v293
        %v329 = vunpack.c.l.b16 %v240
        %v330 = vunpack.c.l.b16 %v241
        %v331 = vunpack.c.l.b16 %v242
        %v332 = vunpack.c.l.b16 %v243
        %v333 = vunpack.c.l.b16 %v244
        %v334 = vunpack.c.l.b16 %v245
        %v335 = vunpack.c.l.b16 %v246
        %v336 = vunpack.c.l.b16 %v247
        %v337 = vunpack.c.l.b16 %v248
        %v338 = vunpack.c.l.b16 %v249
        %v339 = vunpack.c.l.b16 %v250
        %v340 = vunpack.c.l.b16 %v251
        %v341 = vunpack.c.l.b16 %v252
        %v342 = vunpack.c.l.b16 %v253
        %v343 = vunpack.c.l.b16 %v254
        %v344 = vunpack.c.l.b16 %v255
        %v345 = vunpack.c.l.b16 %v256
        %v346 = vunpack.c.l.b16 %v257
        %v347 = vunpack.c.l.b16 %v258
        %v348 = vunpack.c.l.b16 %v259
        %v349 = vunpack.c.l.b16 %v260
        %v350 = vunpack.c.l.b16 %v261
        %v351 = vunpack.c.l.b16 %v262
        %v352 = vunpack.c.l.b16 %v263
        %v353 = vunpack.c.l.b16 %v264
        %v354 = vunpack.c.l.b16 %v265
        %v355 = vunpack.c.l.b16 %v266
        %v356 = vunpack.c.l.b16 %v267
        %v357 = vunpack.c.l.b16 %v268
        %v358 = vunpack.c.l.b16 %v269
        %v359 = vunpack.c.l.b16 %v270
        %v360 = vunpack.c.l.b16 %v271
        %v361 = vpack.c.b16 %v330, %v329
        %v362 = vpack.c.b16 %v332, %v331
        %v363 = vpack.c.b16 %v334, %v333
        %v364 = vpack.c.b16 %v336, %v335
        %v365 = vpack.c.b16 %v338, %v337
        %v366 = vpack.c.b16 %v340, %v339
        %v367 = vpack.c.b16 %v342, %v341
        %v368 = vpack.c.b16 %v344, %v343
        %v369 = vpack.c.b16 %v346, %v345
        %v370 = vpack.c.b16 %v348, %v347
        %v371 = vpack.c.b16 %v350, %v349
        %v372 = vpack.c.b16 %v352, %v351
        %v373 = vpack.c.b16 %v354, %v353
        %v374 = vpack.c.b16 %v356, %v355
        %v375 = vpack.c.b16 %v358, %v357
        %v376 = vpack.c.b16 %v360, %v359
        %393 = vmatprep.subr.bf16.mxu0 0
        %394 = vmatpush1.bf16.msra.mxu0 %v361
        %395 = vmatprep.subr.bf16.mxu0 0
        %396 = vmatpush1.bf16.msra.mxu0 %v362
        %397 = vmatprep.subr.bf16.mxu0 0
        %398 = vmatpush1.bf16.msra.mxu0 %v363
        %399 = vmatprep.subr.bf16.mxu0 0
        %400 = vmatpush1.bf16.msra.mxu0 %v364
        %401 = vmatprep.subr.bf16.mxu0 0
        %402 = vmatpush1.bf16.msra.mxu0 %v365
        %403 = vmatprep.subr.bf16.mxu0 0
        %404 = vmatpush1.bf16.msra.mxu0 %v366
        %405 = vmatprep.subr.bf16.mxu0 0
        %406 = vmatpush1.bf16.msra.mxu0 %v367
        %407 = vmatprep.subr.bf16.mxu0 0
        %408 = vmatpush1.bf16.msra.mxu0 %v368
        %409 = vmatprep.subr.bf16.mxu0 0
        %410 = vmatpush1.bf16.msra.mxu0 %v369
        %411 = vmatprep.subr.bf16.mxu0 0
        %412 = vmatpush1.bf16.msra.mxu0 %v370
        %413 = vmatprep.subr.bf16.mxu0 0
        %414 = vmatpush1.bf16.msra.mxu0 %v371
        %415 = vmatprep.subr.bf16.mxu0 0
        %416 = vmatpush1.bf16.msra.mxu0 %v372
        %417 = vmatprep.subr.bf16.mxu0 0
        %418 = vmatpush1.bf16.msra.mxu0 %v373
        %419 = vmatprep.subr.bf16.mxu0 0
        %420 = vmatpush1.bf16.msra.mxu0 %v374
        %421 = vmatprep.subr.bf16.mxu0 0
        %422 = vmatpush1.bf16.msra.mxu0 %v375
        %423 = vmatprep.subr.bf16.mxu0 0
        %424 = vmatpush1.bf16.msra.mxu0 %v376
        %425 = vmatprep.mubr.bf16.mxu0 %v294
        %426 = vmatmul.mubr.bf16.gmra.mrb[0].mxu0 %v287
        %v427 = vpop.f32.mrb[0].mxu0
        %v428 = vadd.f32 0.0, %v427
        %v429 = vpop.f32.mrb[0].mxu0
        %v430 = vpop.f32.mrb[0].mxu0
        %v431 = vpop.f32.mrb[0].mxu0
        %432 = vdwg.mxu0
        %v433 = vadd.f32 %v238, %v428
        %434 = vst [vmem:[#allocation2] sm:$0x3] %v433
        %p435 = scmp.eq.s32.totalorder %s17, 1
        // Predicated region
        $region45: #{encoder_model_forward.7} parent=39 // pred_check
          %p436 = pneg %p435
        $region46: #{encoder_model_forward.7} parent=39 // pred_check_branch
          %438 = sbr.rel (%p436) target = $region48
        $region47: #{encoder_model_forward.7} parent=39 // pred_region
          %v439 = vld [vmem:[#allocation2] sm:$0x3]
          %v440 = vld [vmem:[%s2] sm:$0x1]
          %v442 = vlaneseq
          %v443 = vshrl.u32 %v442, 7
          %v444 = vsub.s32 0, %v443
          %v445 = vrot.slane %v440, %v444
          %v447 = vadd.f32 %v439, %v445
          %v448 = vpack.c.bf16 %v447, %v447
          %v449 = vld [vmem:[%s3] sm:$0xf]
          %v450 = vld [vmem:[%s3 + $0x4] sm:$0xf]
          %v451 = vld [vmem:[%s3 + $0x8] sm:$0xf]
          %v452 = vld [vmem:[%s3 + $0xc] sm:$0xf]
          %v453 = vld [vmem:[%s3 + $0x10] sm:$0xf]
          %v454 = vld [vmem:[%s3 + $0x14] sm:$0xf]
          %v455 = vld [vmem:[%s3 + $0x18] sm:$0xf]
          %v456 = vld [vmem:[%s3 + $0x1c] sm:$0xf]
          %v457 = vld [vmem:[%s3 + $0x20] sm:$0xf]
          %v458 = vld [vmem:[%s3 + $0x24] sm:$0xf]
          %v459 = vld [vmem:[%s3 + $0x28] sm:$0xf]
          %v460 = vld [vmem:[%s3 + $0x2c] sm:$0xf]
          %v461 = vld [vmem:[%s3 + $0x30] sm:$0xf]
          %v462 = vld [vmem:[%s3 + $0x34] sm:$0xf]
          %v463 = vld [vmem:[%s3 + $0x38] sm:$0xf]
          %v464 = vld [vmem:[%s3 + $0x3c] sm:$0xf]
          %v465 = vld [vmem:[%s4] sm:$0x1]
          %v467 = vlaneseq
          %v468 = vshrl.u32 %v467, 7
          %v469 = vsub.s32 0, %v468
          %v470 = vrot.slane %v465, %v469
          %v488 = vunpack.c.l.b16 %v449
          %v489 = vunpack.c.l.b16 %v450
          %v490 = vunpack.c.l.b16 %v451
          %v491 = vunpack.c.l.b16 %v452
          %v492 = vunpack.c.l.b16 %v453
          %v493 = vunpack.c.l.b16 %v454
          %v494 = vunpack.c.l.b16 %v455
          %v495 = vunpack.c.l.b16 %v456
          %v496 = vunpack.c.l.b16 %v457
          %v497 = vunpack.c.l.b16 %v458
          %v498 = vunpack.c.l.b16 %v459
          %v499 = vunpack.c.l.b16 %v460
          %v500 = vunpack.c.l.b16 %v461
          %v501 = vunpack.c.l.b16 %v462
          %v502 = vunpack.c.l.b16 %v463
          %v503 = vunpack.c.l.b16 %v464
          %v504 = vpack.c.b16 %v489, %v488
          %v505 = vpack.c.b16 %v491, %v490
          %v506 = vpack.c.b16 %v493, %v492
          %v507 = vpack.c.b16 %v495, %v494
          %v508 = vpack.c.b16 %v497, %v496
          %v509 = vpack.c.b16 %v499, %v498
          %v510 = vpack.c.b16 %v501, %v500
          %v511 = vpack.c.b16 %v503, %v502
          %520 = vmatprep.subr.bf16.mxu0 0
          %521 = vmatpush1.bf16.msra.mxu0 %v504
          %522 = vmatprep.subr.bf16.mxu0 0
          %523 = vmatpush1.bf16.msra.mxu0 %v505
          %524 = vmatprep.subr.bf16.mxu0 0
          %525 = vmatpush1.bf16.msra.mxu0 %v506
          %526 = vmatprep.subr.bf16.mxu0 0
          %527 = vmatpush1.bf16.msra.mxu0 %v507
          %528 = vmatprep.subr.bf16.mxu0 0
          %529 = vmatpush1.bf16.msra.mxu0 %v508
          %530 = vmatprep.subr.bf16.mxu0 0
          %531 = vmatpush1.bf16.msra.mxu0 %v509
          %532 = vmatprep.subr.bf16.mxu0 0
          %533 = vmatpush1.bf16.msra.mxu0 %v510
          %534 = vmatprep.subr.bf16.mxu0 0
          %535 = vmatpush1.bf16.msra.mxu0 %v511
          %536 = vmatprep.subr.bf16.mxu0 0
          %537 = vmatpush1.bf16.msra.mxu0 0
          %538 = vmatprep.subr.bf16.mxu0 0
          %539 = vmatpush1.bf16.msra.mxu0 0
          %540 = vmatprep.subr.bf16.mxu0 0
          %541 = vmatpush1.bf16.msra.mxu0 0
          %542 = vmatprep.subr.bf16.mxu0 0
          %543 = vmatpush1.bf16.msra.mxu0 0
          %544 = vmatprep.subr.bf16.mxu0 0
          %545 = vmatpush1.bf16.msra.mxu0 0
          %546 = vmatprep.subr.bf16.mxu0 0
          %547 = vmatpush1.bf16.msra.mxu0 0
          %548 = vmatprep.subr.bf16.mxu0 0
          %549 = vmatpush1.bf16.msra.mxu0 0
          %550 = vmatprep.subr.bf16.mxu0 0
          %551 = vmatpush1.bf16.msra.mxu0 0
          %552 = vmatprep.mubr.bf16.mxu0 0
          %553 = vmatmul.mubr.bf16.gmra.mrb[0].mxu0 %v448
          %v554 = vpop.f32.mrb[0].mxu0
          %v555 = vadd.f32 %v470, %v554
          %v556 = vpop.f32.mrb[0].mxu0
          %v557 = vpop.f32.mrb[0].mxu0
          %v558 = vpop.f32.mrb[0].mxu0
          %559 = vdwg.mxu0
          %vm560 = vcmask 33792
          %561 = vst.msk [vmem:[#allocation3] sm:$0x3] %vm560, %v555
        $region48: #{encoder_model_forward.7} parent=39 // pred_fallthru
          _
        // Predicated region
        $region49: #{encoder_model_forward.7} parent=39 // pred_check
          %p562 = pneg %p145
        $region50: #{encoder_model_forward.7} parent=39 // pred_check_branch
          %564 = sbr.rel (%p562) target = $region52
        $region51: #{encoder_model_forward.7} parent=39 // pred_region
          %s566 = ssub.s32 32, 32
          %567 = vsyncadd [#allocation4], %s566
          %s569 = sshll.u32 [#allocation3], 4
          %s570 = int_to_ptr.vmem [resolvable:$true] %s569
          %572 = dma.vmem_to_hbm [thread:$0]  %s570, 32, %s5, [#allocation4]
        $region52: #{encoder_model_forward.7} parent=39 // pred_fallthru
          _
        // Predicated region
        $region53: #{encoder_model_forward.7} parent=39 // pred_check
          %p573 = pneg %p145
        $region54: #{encoder_model_forward.7} parent=39 // pred_check_branch
          %575 = sbr.rel (%p573) target = $region56
        $region55: #{encoder_model_forward.7} parent=39 // pred_region
          %576 = dma.done [#allocation4], 32
        $region56: #{encoder_model_forward.7} parent=39 // pred_fallthru
          _
      $region40: #{encoder_model_forward.7} parent=5 // pred_fallthru
        _
      %p577 = scmp.le.s32.totalorder 2, %s12
      // Predicated region
      $region57: #{encoder_model_forward.7} parent=5 // pred_check
        %p578 = pneg %p577
      $region58: #{encoder_model_forward.7} parent=5 // pred_check_branch
        %580 = sbr.rel (%p578) target = $region60
      $region59: #{encoder_model_forward.7} parent=5 // pred_region
        %s581 = ssub.s32 %s12, 2
      $region60: #{encoder_model_forward.7} parent=5 // pred_fallthru
        _
    $region6: #{encoder_model_forward.7} parent=1 // loop_footer
      %s16 = sadd.s32 1, %s12
    $region7: #{encoder_model_forward.7} parent=1 // loop_footer_branch
      %11 = sbr.rel target = $region3
    $region8: #{encoder_model_forward.7} parent=1 // loop_exit
      _
    %582 = vsyncpa [#allocation4], 1
    %s583 = scalar_lea.sflag [#allocation4], 1
    %584 = vsyncpa %s583, 1

</llo_original>
